<compile_context>
chip_gen: v7x
topology: tpu7x:2x2x1
jax: 0.10.0
libtpu: 0.0.40
codegen_flags: <defaults>
</compile_context>

<pallas_src>
import jax
import jax.numpy as jnp
from jax import lax
from jax.experimental import pallas as pl
from jax.experimental.pallas import tpu as pltpu  # noqa: F401  (TPU backend)

# ---------------- model hyper-parameters (small, synthetic) ------------------
B = 2            # batch
C = 4            # input channels
IMG = 16         # image H = W
P = 8            # patch size
N_PATCH = (IMG // P) ** 2          # 4
S = N_PATCH + 1                    # 5 tokens (CLS + patches)
BS = B * S                         # 10 token rows total (batch folded into sublanes)
D = 32           # hidden size
NUM_HEADS = 2
HEAD_DIM = D // NUM_HEADS          # 16
MLP = 4 * D                        # 128
NUM_LAYERS = 2
EPS = 1e-12      # HF ViT layer_norm_eps
K_PATCH = C * P * P                # 256


# ------------------------------ kernel helpers -------------------------------
def _layernorm(x, gamma, beta):
    mu = jnp.mean(x, axis=-1, keepdims=True)
    var = jnp.mean((x - mu) * (x - mu), axis=-1, keepdims=True)
    inv = lax.rsqrt(var + EPS)
    return (x - mu) * inv * gamma + beta


def _gelu(x):
    # TODO(synk): HF ViT uses exact (erf) GELU; tanh approximation used here
    # (the pure-JAX reference below uses the same approximation).
    c = 0.7978845608028654  # sqrt(2/pi)
    return 0.5 * x * (1.0 + jnp.tanh(c * (x + 0.044715 * x * x * x)))


# ------------------------------ fused Pallas kernel ---------------------------
def _phikon_kernel(xp_ref, wpatch_ref, addend_ref, mask_ref, sel_ref,
                   ln_ref, wqkv_ref, bqkv_ref, wo_ref, bo_ref,
                   w1_ref, b1_ref, w2_ref, b2_ref, fln_ref,
                   o_ref):
    f32 = jnp.float32

    # ---- patch embedding for all batches + CLS/pos-emb/conv-bias addend ----
    # xp rows at the CLS slots are zero, so the addend alone supplies the CLS token.
    x = jnp.dot(xp_ref[...], wpatch_ref[...],
                preferred_element_type=f32) + addend_ref[...]          # (BS, D)

    mask = mask_ref[...]                  # (BS, BS): 0 intra-batch, -1e30 cross-batch

    for l in range(NUM_LAYERS):           # static unroll; all weights resident in VMEM
        # ---------------- multi-head self-attention (pre-LN) -----------------
        xn = _layernorm(x, ln_ref[l, 0], ln_ref[l, 1])                 # (BS, D)

        # single fused QKV projection (softmax scale pre-folded into Wq/bq,
        # key bias dropped — it cancels in softmax).
        qkv = jnp.dot(xn, wqkv_ref[l], preferred_element_type=f32) + bqkv_ref[l]   # (BS, 3D)
        wo_l = wo_ref[l]                                               # (D, D) lane-dense

        attn = bo_ref[l]                                               # (1, D) -> broadcast
        for h in range(NUM_HEADS):        # cheap static lane slices of the fused QKV
            q_h = qkv[:, h * HEAD_DIM:(h + 1) * HEAD_DIM]
            k_h = qkv[:, D + h * HEAD_DIM:D + (h + 1) * HEAD_DIM]
            v_h = qkv[:, 2 * D + h * HEAD_DIM:2 * D + (h + 1) * HEAD_DIM]

            # q @ k^T without an explicit transpose (contract both last dims);
            # block-diagonal mask == independent per-batch softmax, no slicing.
            sc = lax.dot_general(q_h, k_h, (((1,), (1,)), ((), ())),
                                 preferred_element_type=f32) + mask
            sc = sc - jnp.max(sc, axis=-1, keepdims=True)
            p = jnp.exp(sc)
            p = p * pl.reciprocal(jnp.sum(p, axis=-1, keepdims=True), approx=True)
            ctx = jnp.dot(p, v_h, preferred_element_type=f32)          # (BS, HD)

            # per-head sublane-row slice of the (D, D) output projection;
            # summing over heads == concat-then-matmul (no lane concatenation).
            attn = attn + jnp.dot(ctx, wo_l[h * HEAD_DIM:(h + 1) * HEAD_DIM, :],
                                  preferred_element_type=f32)
        x = x + attn                                                   # residual 1

        # ------------------------------- MLP ---------------------------------
        xn2 = _layernorm(x, ln_ref[l, 2], ln_ref[l, 3])
        h1 = _gelu(jnp.dot(xn2, w1_ref[l], preferred_element_type=f32) + b1_ref[l])
        x = x + jnp.dot(h1, w2_ref[l], preferred_element_type=f32) + b2_ref[l]   # residual 2

    # ---- CLS rows gathered with one tiny one-hot matmul, one LN, one store ----
    cls = jnp.dot(sel_ref[...], x, preferred_element_type=f32)         # (B, D)
    o_ref[...] = _layernorm(cls, fln_ref[0], fln_ref[1])


# ------------------------------ parameter init --------------------------------
def init_params(key):
    ks = list(jax.random.split(key, 64))
    nxt = lambda: ks.pop()
    std = 0.02
    params = {
        "conv_w": jax.random.normal(nxt(), (D, C, P, P), jnp.float32) * std,
        "conv_b": jax.random.normal(nxt(), (D,), jnp.float32) * std,
        "cls": jax.random.normal(nxt(), (1, 1, D), jnp.float32) * std,
        "pos": jax.random.normal(nxt(), (1, S, D), jnp.float32) * std,
        "final_g": jnp.ones((D,), jnp.float32),
        "final_b": jnp.zeros((D,), jnp.float32),
        "layers": [],
    }
    for _ in range(NUM_LAYERS):
        lyr = {
            "ln1_g": jnp.ones((D,), jnp.float32),
            "ln1_b": jnp.zeros((D,), jnp.float32),
            "wq": jax.random.normal(nxt(), (D, D), jnp.float32) * std,
            "bq": jax.random.normal(nxt(), (D,), jnp.float32) * std,
            "wk": jax.random.normal(nxt(), (D, D), jnp.float32) * std,
            "bk": jax.random.normal(nxt(), (D,), jnp.float32) * std,
            "wv": jax.random.normal(nxt(), (D, D), jnp.float32) * std,
            "bv": jax.random.normal(nxt(), (D,), jnp.float32) * std,
            "wo": jax.random.normal(nxt(), (D, D), jnp.float32) * std,
            "bo": jax.random.normal(nxt(), (D,), jnp.float32) * std,
            "ln2_g": jnp.ones((D,), jnp.float32),
            "ln2_b": jnp.zeros((D,), jnp.float32),
            "w1": jax.random.normal(nxt(), (D, MLP), jnp.float32) * std,
            "b1": jax.random.normal(nxt(), (MLP,), jnp.float32) * std,
            "w2": jax.random.normal(nxt(), (MLP, D), jnp.float32) * std,
            "b2": jax.random.normal(nxt(), (D,), jnp.float32) * std,
        }
        params["layers"].append(lyr)
    return params


# -------------------- one-time parameter packing (done once) ------------------
def pack_params(params):
    lyrs = params["layers"]
    scale = 1.0 / (HEAD_DIM ** 0.5)

    # Additive slab for token assembly: row b*S is the CLS token (+pos[0]);
    # patch rows carry pos[s] + conv bias (the conv matmul output is added in-kernel).
    cls_row = (params["cls"][0, 0] + params["pos"][0, 0])[None, :]          # (1, D)
    patch_rows = params["pos"][0, 1:] + params["conv_b"][None, :]           # (N_PATCH, D)
    addend = jnp.tile(jnp.concatenate([cls_row, patch_rows], axis=0), (B, 1))   # (BS, D)

    # Block-diagonal attention mask: tokens attend only within their own batch element.
    batch_id = jnp.arange(BS) // S
    mask = jnp.where(batch_id[:, None] == batch_id[None, :], 0.0, -1e30).astype(jnp.float32)

    # One-hot CLS-row selector: sel @ x picks rows {0, S, 2S, ...}.
    sel = (jnp.arange(BS)[None, :] == (jnp.arange(B) * S)[:, None]).astype(jnp.float32)  # (B, BS)

    # Fused, lane-dense QKV weights: columns [Wq*scale | Wk | Wv], head h occupies
    # lanes h*HD:(h+1)*HD within each D-wide block.  Key bias dropped (cancels in softmax).
    wqkv = jnp.stack([jnp.concatenate([l["wq"] * scale, l["wk"], l["wv"]], axis=1)
                      for l in lyrs])                                        # (L, D, 3D)
    bqkv = jnp.stack([jnp.concatenate([l["bq"] * scale, jnp.zeros_like(l["bk"]), l["bv"]])[None, :]
                      for l in lyrs])                                        # (L, 1, 3D)

    return {
        "w_patch": params["conv_w"].reshape(D, K_PATCH).T,                   # (K_PATCH, D)
        "addend": addend,                                                    # (BS, D)
        "mask": mask,                                                        # (BS, BS)
        "sel": sel,                                                          # (B, BS)
        "ln": jnp.stack([jnp.stack([l["ln1_g"], l["ln1_b"], l["ln2_g"], l["ln2_b"]])
                         for l in lyrs]).reshape(NUM_LAYERS, 4, 1, D),       # (L, 4, 1, D)
        "wqkv": wqkv,                                                        # (L, D, 3D)
        "bqkv": bqkv,                                                        # (L, 1, 3D)
        "wo": jnp.stack([l["wo"] for l in lyrs]),                            # (L, D, D) lane-dense
        "bo": jnp.stack([l["bo"][None, :] for l in lyrs]),                   # (L, 1, D)
        "w1": jnp.stack([l["w1"] for l in lyrs]),                            # (L, D, MLP)
        "b1": jnp.stack([l["b1"][None, :] for l in lyrs]),                   # (L, 1, MLP)
        "w2": jnp.stack([l["w2"] for l in lyrs]),                            # (L, MLP, D)
        "b2": jnp.stack([l["b2"][None, :] for l in lyrs]),                   # (L, 1, D)
        "fln": jnp.stack([params["final_g"][None, :], params["final_b"][None, :]]),  # (2, 1, D)
    }


# ------------------------------ forward (Pallas) -------------------------------
@jax.jit
def phikon_forward(x, packed):
    # x: (B, C, IMG, IMG) NCHW, matching the PyTorch module.
    # Patch extraction + zero row at each CLS slot (input-side glue only).
    xp = x.reshape(B, C, IMG // P, P, IMG // P, P)
    xp = xp.transpose(0, 2, 4, 1, 3, 5).reshape(B, N_PATCH, K_PATCH)
    xp = jnp.pad(xp, ((0, 0), (1, 0), (0, 0)))          # CLS slot -> zero pixel row
    xp = xp.reshape(BS, K_PATCH)

    # Single fused kernel launch: patch embed -> L encoder layers -> final LN on CLS.
    return pl.pallas_call(
        _phikon_kernel,
        out_shape=jax.ShapeDtypeStruct((B, D), jnp.float32),
    )(xp, packed["w_patch"], packed["addend"], packed["mask"], packed["sel"],
      packed["ln"], packed["wqkv"], packed["bqkv"], packed["wo"], packed["bo"],
      packed["w1"], packed["b1"], packed["w2"], packed["b2"], packed["fln"])


# ------------------------------ pure-JAX reference -----------------------------
def phikon_reference(x, params):
    xp = x.reshape(B, C, IMG // P, P, IMG // P, P)
    xp = xp.transpose(0, 2, 4, 1, 3, 5).reshape(B * N_PATCH, K_PATCH)
    w_flat = params["conv_w"].reshape(D, K_PATCH).T
    emb = (xp @ w_flat + params["conv_b"]).reshape(B, N_PATCH, D)
    cls = jnp.broadcast_to(params["cls"], (B, 1, D))
    t = jnp.concatenate([cls, emb], axis=1) + params["pos"]

    def ln(x_, g, b):
        mu = jnp.mean(x_, axis=-1, keepdims=True)
        var = jnp.mean((x_ - mu) ** 2, axis=-1, keepdims=True)
        return (x_ - mu) / jnp.sqrt(var + EPS) * g + b

    def gelu(x_):
        c = 0.7978845608028654
        return 0.5 * x_ * (1.0 + jnp.tanh(c * (x_ + 0.044715 * x_ ** 3)))

    for lyr in params["layers"]:
        xn = ln(t, lyr["ln1_g"], lyr["ln1_b"])
        q = xn @ lyr["wq"] + lyr["bq"]
        k = xn @ lyr["wk"] + lyr["bk"]
        v = xn @ lyr["wv"] + lyr["bv"]
        qh = q.reshape(B, S, NUM_HEADS, HEAD_DIM).transpose(0, 2, 1, 3)
        kh = k.reshape(B, S, NUM_HEADS, HEAD_DIM).transpose(0, 2, 1, 3)
        vh = v.reshape(B, S, NUM_HEADS, HEAD_DIM).transpose(0, 2, 1, 3)
        sc = jnp.einsum("bhqd,bhkd->bhqk", qh, kh) / (HEAD_DIM ** 0.5)
        p = jax.nn.softmax(sc, axis=-1)
        ctx = jnp.einsum("bhqk,bhkd->bhqd", p, vh).transpose(0, 2, 1, 3).reshape(B, S, D)
        t = t + ctx @ lyr["wo"] + lyr["bo"]
        xn2 = ln(t, lyr["ln2_g"], lyr["ln2_b"])
        t = t + gelu(xn2 @ lyr["w1"] + lyr["b1"]) @ lyr["w2"] + lyr["b2"]

    cls_tok = t[:, 0, :]
    return ln(cls_tok, params["final_g"], params["final_b"])


# ------------------------------------ main -------------------------------------
if __name__ == "__main__":
    key = jax.random.PRNGKey(0)
    k_x, k_p = jax.random.split(key)
    x = jax.random.normal(k_x, (B, C, IMG, IMG), jnp.float32)
    params = init_params(k_p)
    packed = pack_params(params)

    out = jax.block_until_ready(phikon_forward(x, packed))
    ref = jax.block_until_ready(phikon_reference(x, params))

    assert out.shape == (B, D), out.shape
    max_err = float(jnp.max(jnp.abs(out - ref)))
    # tolerance slightly relaxed vs f32 exact because the softmax denominator
    # uses the EUP approximate reciprocal (pl.reciprocal(approx=True)).
    assert jnp.allclose(out, ref, atol=1e-3, rtol=1e-3), max_err
    print("KERNEL_OK")
</pallas_src>

<mosaic_0001>
module attributes {stable_mosaic.version = 11 : i64} {
  func.func @_phikon_kernel(%arg0: memref<10x256xf32, #tpu.memory_space<vmem>>, %arg1: memref<256x32xf32, #tpu.memory_space<vmem>>, %arg2: memref<10x32xf32, #tpu.memory_space<vmem>>, %arg3: memref<10x10xf32, #tpu.memory_space<vmem>>, %arg4: memref<2x10xf32, #tpu.memory_space<vmem>>, %arg5: memref<2x4x1x32xf32, #tpu.memory_space<vmem>>, %arg6: memref<2x32x96xf32, #tpu.memory_space<vmem>>, %arg7: memref<2x1x96xf32, #tpu.memory_space<vmem>>, %arg8: memref<2x32x32xf32, #tpu.memory_space<vmem>>, %arg9: memref<2x1x32xf32, #tpu.memory_space<vmem>>, %arg10: memref<2x32x128xf32, #tpu.memory_space<vmem>>, %arg11: memref<2x1x128xf32, #tpu.memory_space<vmem>>, %arg12: memref<2x128x32xf32, #tpu.memory_space<vmem>>, %arg13: memref<2x1x32xf32, #tpu.memory_space<vmem>>, %arg14: memref<2x1x32xf32, #tpu.memory_space<vmem>>, %arg15: memref<2x32xf32, #tpu.memory_space<vmem>>) attributes {dimension_semantics = [], scalar_prefetch = 0 : i64, scratch_operands = 0 : i64, tpu.core_type = #tpu.core_type<tc>} {
    %c0 = arith.constant 0 : index
    %c0_0 = arith.constant 0 : index
    %0 = vector.load %arg0[%c0, %c0_0] : memref<10x256xf32, #tpu.memory_space<vmem>>, vector<10x256xf32>
    %c0_1 = arith.constant 0 : index
    %c0_2 = arith.constant 0 : index
    %1 = vector.load %arg1[%c0_1, %c0_2] : memref<256x32xf32, #tpu.memory_space<vmem>>, vector<256x32xf32>
    %cst = arith.constant dense<0.000000e+00> : vector<10x32xf32>
    %2 = tpu.matmul %0, %1, %cst {dimension_numbers = #tpu.dot_dimension_numbers<[1], [0], [0], [1], [0, 0, 1, 1], [], []>} : vector<10x256xf32>, vector<256x32xf32>, vector<10x32xf32> -> vector<10x32xf32>
    %c0_3 = arith.constant 0 : index
    %c0_4 = arith.constant 0 : index
    %3 = vector.load %arg2[%c0_3, %c0_4] : memref<10x32xf32, #tpu.memory_space<vmem>>, vector<10x32xf32>
    %4 = arith.addf %2, %3 : vector<10x32xf32>
    %c0_5 = arith.constant 0 : index
    %c0_6 = arith.constant 0 : index
    %5 = vector.load %arg3[%c0_5, %c0_6] : memref<10x10xf32, #tpu.memory_space<vmem>>, vector<10x10xf32>
    %c0_7 = arith.constant 0 : index
    %c0_8 = arith.constant 0 : index
    %c0_9 = arith.constant 0 : index
    %c0_10 = arith.constant 0 : index
    %6 = vector.load %arg5[%c0_7, %c0_8, %c0_9, %c0_10] : memref<2x4x1x32xf32, #tpu.memory_space<vmem>>, vector<1x1x1x32xf32>
    %7 = vector.shape_cast %6 : vector<1x1x1x32xf32> to vector<1x32xf32>
    %c0_11 = arith.constant 0 : index
    %c1 = arith.constant 1 : index
    %c0_12 = arith.constant 0 : index
    %c0_13 = arith.constant 0 : index
    %8 = vector.load %arg5[%c0_11, %c1, %c0_12, %c0_13] : memref<2x4x1x32xf32, #tpu.memory_space<vmem>>, vector<1x1x1x32xf32>
    %9 = vector.shape_cast %8 : vector<1x1x1x32xf32> to vector<1x32xf32>
    %cst_14 = arith.constant dense<0.000000e+00> : vector<10xf32>
    %10 = vector.multi_reduction <add>, %4, %cst_14 [1] : vector<10x32xf32> to vector<10xf32>
    %11 = vector.shape_cast %10 : vector<10xf32> to vector<10x1xf32>
    %cst_15 = arith.constant 3.200000e+01 : f32
    %12 = vector.broadcast %cst_15 : f32 to vector<10x1xf32>
    %13 = arith.divf %11, %12 : vector<10x1xf32>
    %14 = vector.broadcast %13 : vector<10x1xf32> to vector<10x32xf32>
    %15 = arith.subf %4, %14 : vector<10x32xf32>
    %16 = vector.broadcast %13 : vector<10x1xf32> to vector<10x32xf32>
    %17 = arith.subf %4, %16 : vector<10x32xf32>
    %18 = arith.mulf %15, %17 : vector<10x32xf32>
    %cst_16 = arith.constant dense<0.000000e+00> : vector<10xf32>
    %19 = vector.multi_reduction <add>, %18, %cst_16 [1] : vector<10x32xf32> to vector<10xf32>
    %20 = vector.shape_cast %19 : vector<10xf32> to vector<10x1xf32>
    %cst_17 = arith.constant 3.200000e+01 : f32
    %21 = vector.broadcast %cst_17 : f32 to vector<10x1xf32>
    %22 = arith.divf %20, %21 : vector<10x1xf32>
    %cst_18 = arith.constant 9.99999996E-13 : f32
    %23 = vector.broadcast %cst_18 : f32 to vector<10x1xf32>
    %24 = arith.addf %22, %23 : vector<10x1xf32>
    %25 = math.rsqrt %24 : vector<10x1xf32>
    %26 = vector.broadcast %13 : vector<10x1xf32> to vector<10x32xf32>
    %27 = arith.subf %4, %26 : vector<10x32xf32>
    %28 = vector.broadcast %25 : vector<10x1xf32> to vector<10x32xf32>
    %29 = arith.mulf %27, %28 : vector<10x32xf32>
    %30 = vector.broadcast %7 : vector<1x32xf32> to vector<10x32xf32>
    %31 = arith.mulf %29, %30 : vector<10x32xf32>
    %32 = vector.broadcast %9 : vector<1x32xf32> to vector<10x32xf32>
    %33 = arith.addf %31, %32 : vector<10x32xf32>
    %c0_19 = arith.constant 0 : index
    %c0_20 = arith.constant 0 : index
    %c0_21 = arith.constant 0 : index
    %34 = vector.load %arg6[%c0_19, %c0_20, %c0_21] : memref<2x32x96xf32, #tpu.memory_space<vmem>>, vector<1x32x96xf32>
    %35 = vector.shape_cast %34 : vector<1x32x96xf32> to vector<32x96xf32>
    %cst_22 = arith.constant dense<0.000000e+00> : vector<10x96xf32>
    %36 = tpu.matmul %33, %35, %cst_22 {dimension_numbers = #tpu.dot_dimension_numbers<[1], [0], [0], [1], [0, 0, 1, 1], [], []>} : vector<10x32xf32>, vector<32x96xf32>, vector<10x96xf32> -> vector<10x96xf32>
    %c0_23 = arith.constant 0 : index
    %c0_24 = arith.constant 0 : index
    %c0_25 = arith.constant 0 : index
    %37 = vector.load %arg7[%c0_23, %c0_24, %c0_25] : memref<2x1x96xf32, #tpu.memory_space<vmem>>, vector<1x1x96xf32>
    %38 = vector.shape_cast %37 : vector<1x1x96xf32> to vector<1x96xf32>
    %39 = vector.broadcast %38 : vector<1x96xf32> to vector<10x96xf32>
    %40 = arith.addf %36, %39 : vector<10x96xf32>
    %c0_26 = arith.constant 0 : index
    %c0_27 = arith.constant 0 : index
    %c0_28 = arith.constant 0 : index
    %41 = vector.load %arg8[%c0_26, %c0_27, %c0_28] : memref<2x32x32xf32, #tpu.memory_space<vmem>>, vector<1x32x32xf32>
    %42 = vector.shape_cast %41 : vector<1x32x32xf32> to vector<32x32xf32>
    %c0_29 = arith.constant 0 : index
    %c0_30 = arith.constant 0 : index
    %c0_31 = arith.constant 0 : index
    %43 = vector.load %arg9[%c0_29, %c0_30, %c0_31] : memref<2x1x32xf32, #tpu.memory_space<vmem>>, vector<1x1x32xf32>
    %44 = vector.shape_cast %43 : vector<1x1x32xf32> to vector<1x32xf32>
    %45 = vector.extract_strided_slice %40 {offsets = [0, 0], sizes = [10, 16], strides = [1, 1]} : vector<10x96xf32> to vector<10x16xf32>
    %46 = vector.extract_strided_slice %40 {offsets = [0, 32], sizes = [10, 16], strides = [1, 1]} : vector<10x96xf32> to vector<10x16xf32>
    %47 = vector.extract_strided_slice %40 {offsets = [0, 64], sizes = [10, 16], strides = [1, 1]} : vector<10x96xf32> to vector<10x16xf32>
    %cst_32 = arith.constant dense<0.000000e+00> : vector<10x10xf32>
    %48 = tpu.matmul %45, %46, %cst_32 {dimension_numbers = #tpu.dot_dimension_numbers<[1], [1], [0], [0], [0, 0, 1, 0], [], []>} : vector<10x16xf32>, vector<10x16xf32>, vector<10x10xf32> -> vector<10x10xf32>
    %49 = arith.addf %48, %5 : vector<10x10xf32>
    %cst_33 = arith.constant dense<0xFF800000> : vector<10xf32>
    %50 = vector.multi_reduction <maximumf>, %49, %cst_33 [1] : vector<10x10xf32> to vector<10xf32>
    %51 = vector.shape_cast %50 : vector<10xf32> to vector<10x1xf32>
    %52 = vector.broadcast %51 : vector<10x1xf32> to vector<10x10xf32>
    %53 = arith.subf %49, %52 : vector<10x10xf32>
    %54 = math.exp %53 : vector<10x10xf32>
    %cst_34 = arith.constant dense<0.000000e+00> : vector<10xf32>
    %55 = vector.multi_reduction <add>, %54, %cst_34 [1] : vector<10x10xf32> to vector<10xf32>
    %56 = vector.shape_cast %55 : vector<10xf32> to vector<10x1xf32>
    %57 = tpu.reciprocal %56 {approx = true} : vector<10x1xf32> -> vector<10x1xf32>
    %58 = vector.broadcast %57 : vector<10x1xf32> to vector<10x10xf32>
    %59 = arith.mulf %54, %58 : vector<10x10xf32>
    %cst_35 = arith.constant dense<0.000000e+00> : vector<10x16xf32>
    %60 = tpu.matmul %59, %47, %cst_35 {dimension_numbers = #tpu.dot_dimension_numbers<[1], [0], [0], [1], [0, 0, 1, 1], [], []>} : vector<10x10xf32>, vector<10x16xf32>, vector<10x16xf32> -> vector<10x16xf32>
    %61 = vector.extract_strided_slice %42 {offsets = [0, 0], sizes = [16, 32], strides = [1, 1]} : vector<32x32xf32> to vector<16x32xf32>
    %cst_36 = arith.constant dense<0.000000e+00> : vector<10x32xf32>
    %62 = tpu.matmul %60, %61, %cst_36 {dimension_numbers = #tpu.dot_dimension_numbers<[1], [0], [0], [1], [0, 0, 1, 1], [], []>} : vector<10x16xf32>, vector<16x32xf32>, vector<10x32xf32> -> vector<10x32xf32>
    %63 = vector.broadcast %44 : vector<1x32xf32> to vector<10x32xf32>
    %64 = arith.addf %63, %62 : vector<10x32xf32>
    %65 = vector.extract_strided_slice %40 {offsets = [0, 16], sizes = [10, 16], strides = [1, 1]} : vector<10x96xf32> to vector<10x16xf32>
    %66 = vector.extract_strided_slice %40 {offsets = [0, 48], sizes = [10, 16], strides = [1, 1]} : vector<10x96xf32> to vector<10x16xf32>
    %67 = vector.extract_strided_slice %40 {offsets = [0, 80], sizes = [10, 16], strides = [1, 1]} : vector<10x96xf32> to vector<10x16xf32>
    %cst_37 = arith.constant dense<0.000000e+00> : vector<10x10xf32>
    %68 = tpu.matmul %65, %66, %cst_37 {dimension_numbers = #tpu.dot_dimension_numbers<[1], [1], [0], [0], [0, 0, 1, 0], [], []>} : vector<10x16xf32>, vector<10x16xf32>, vector<10x10xf32> -> vector<10x10xf32>
    %69 = arith.addf %68, %5 : vector<10x10xf32>
    %cst_38 = arith.constant dense<0xFF800000> : vector<10xf32>
    %70 = vector.multi_reduction <maximumf>, %69, %cst_38 [1] : vector<10x10xf32> to vector<10xf32>
    %71 = vector.shape_cast %70 : vector<10xf32> to vector<10x1xf32>
    %72 = vector.broadcast %71 : vector<10x1xf32> to vector<10x10xf32>
    %73 = arith.subf %69, %72 : vector<10x10xf32>
    %74 = math.exp %73 : vector<10x10xf32>
    %cst_39 = arith.constant dense<0.000000e+00> : vector<10xf32>
    %75 = vector.multi_reduction <add>, %74, %cst_39 [1] : vector<10x10xf32> to vector<10xf32>
    %76 = vector.shape_cast %75 : vector<10xf32> to vector<10x1xf32>
    %77 = tpu.reciprocal %76 {approx = true} : vector<10x1xf32> -> vector<10x1xf32>
    %78 = vector.broadcast %77 : vector<10x1xf32> to vector<10x10xf32>
    %79 = arith.mulf %74, %78 : vector<10x10xf32>
    %cst_40 = arith.constant dense<0.000000e+00> : vector<10x16xf32>
    %80 = tpu.matmul %79, %67, %cst_40 {dimension_numbers = #tpu.dot_dimension_numbers<[1], [0], [0], [1], [0, 0, 1, 1], [], []>} : vector<10x10xf32>, vector<10x16xf32>, vector<10x16xf32> -> vector<10x16xf32>
    %81 = vector.extract_strided_slice %42 {offsets = [16, 0], sizes = [16, 32], strides = [1, 1]} : vector<32x32xf32> to vector<16x32xf32>
    %cst_41 = arith.constant dense<0.000000e+00> : vector<10x32xf32>
    %82 = tpu.matmul %80, %81, %cst_41 {dimension_numbers = #tpu.dot_dimension_numbers<[1], [0], [0], [1], [0, 0, 1, 1], [], []>} : vector<10x16xf32>, vector<16x32xf32>, vector<10x32xf32> -> vector<10x32xf32>
    %83 = arith.addf %64, %82 : vector<10x32xf32>
    %84 = arith.addf %4, %83 : vector<10x32xf32>
    %c0_42 = arith.constant 0 : index
    %c2 = arith.constant 2 : index
    %c0_43 = arith.constant 0 : index
    %c0_44 = arith.constant 0 : index
    %85 = vector.load %arg5[%c0_42, %c2, %c0_43, %c0_44] : memref<2x4x1x32xf32, #tpu.memory_space<vmem>>, vector<1x1x1x32xf32>
    %86 = vector.shape_cast %85 : vector<1x1x1x32xf32> to vector<1x32xf32>
    %c0_45 = arith.constant 0 : index
    %c3 = arith.constant 3 : index
    %c0_46 = arith.constant 0 : index
    %c0_47 = arith.constant 0 : index
    %87 = vector.load %arg5[%c0_45, %c3, %c0_46, %c0_47] : memref<2x4x1x32xf32, #tpu.memory_space<vmem>>, vector<1x1x1x32xf32>
    %88 = vector.shape_cast %87 : vector<1x1x1x32xf32> to vector<1x32xf32>
    %cst_48 = arith.constant dense<0.000000e+00> : vector<10xf32>
    %89 = vector.multi_reduction <add>, %84, %cst_48 [1] : vector<10x32xf32> to vector<10xf32>
    %90 = vector.shape_cast %89 : vector<10xf32> to vector<10x1xf32>
    %cst_49 = arith.constant 3.200000e+01 : f32
    %91 = vector.broadcast %cst_49 : f32 to vector<10x1xf32>
    %92 = arith.divf %90, %91 : vector<10x1xf32>
    %93 = vector.broadcast %92 : vector<10x1xf32> to vector<10x32xf32>
    %94 = arith.subf %84, %93 : vector<10x32xf32>
    %95 = vector.broadcast %92 : vector<10x1xf32> to vector<10x32xf32>
    %96 = arith.subf %84, %95 : vector<10x32xf32>
    %97 = arith.mulf %94, %96 : vector<10x32xf32>
    %cst_50 = arith.constant dense<0.000000e+00> : vector<10xf32>
    %98 = vector.multi_reduction <add>, %97, %cst_50 [1] : vector<10x32xf32> to vector<10xf32>
    %99 = vector.shape_cast %98 : vector<10xf32> to vector<10x1xf32>
    %cst_51 = arith.constant 3.200000e+01 : f32
    %100 = vector.broadcast %cst_51 : f32 to vector<10x1xf32>
    %101 = arith.divf %99, %100 : vector<10x1xf32>
    %cst_52 = arith.constant 9.99999996E-13 : f32
    %102 = vector.broadcast %cst_52 : f32 to vector<10x1xf32>
    %103 = arith.addf %101, %102 : vector<10x1xf32>
    %104 = math.rsqrt %103 : vector<10x1xf32>
    %105 = vector.broadcast %92 : vector<10x1xf32> to vector<10x32xf32>
    %106 = arith.subf %84, %105 : vector<10x32xf32>
    %107 = vector.broadcast %104 : vector<10x1xf32> to vector<10x32xf32>
    %108 = arith.mulf %106, %107 : vector<10x32xf32>
    %109 = vector.broadcast %86 : vector<1x32xf32> to vector<10x32xf32>
    %110 = arith.mulf %108, %109 : vector<10x32xf32>
    %111 = vector.broadcast %88 : vector<1x32xf32> to vector<10x32xf32>
    %112 = arith.addf %110, %111 : vector<10x32xf32>
    %c0_53 = arith.constant 0 : index
    %c0_54 = arith.constant 0 : index
    %c0_55 = arith.constant 0 : index
    %113 = vector.load %arg10[%c0_53, %c0_54, %c0_55] : memref<2x32x128xf32, #tpu.memory_space<vmem>>, vector<1x32x128xf32>
    %114 = vector.shape_cast %113 : vector<1x32x128xf32> to vector<32x128xf32>
    %cst_56 = arith.constant dense<0.000000e+00> : vector<10x128xf32>
    %115 = tpu.matmul %112, %114, %cst_56 {dimension_numbers = #tpu.dot_dimension_numbers<[1], [0], [0], [1], [0, 0, 1, 1], [], []>} : vector<10x32xf32>, vector<32x128xf32>, vector<10x128xf32> -> vector<10x128xf32>
    %c0_57 = arith.constant 0 : index
    %c0_58 = arith.constant 0 : index
    %c0_59 = arith.constant 0 : index
    %116 = vector.load %arg11[%c0_57, %c0_58, %c0_59] : memref<2x1x128xf32, #tpu.memory_space<vmem>>, vector<1x1x128xf32>
    %117 = vector.shape_cast %116 : vector<1x1x128xf32> to vector<1x128xf32>
    %118 = vector.broadcast %117 : vector<1x128xf32> to vector<10x128xf32>
    %119 = arith.addf %115, %118 : vector<10x128xf32>
    %cst_60 = arith.constant 5.000000e-01 : f32
    %120 = vector.broadcast %cst_60 : f32 to vector<10x128xf32>
    %121 = arith.mulf %120, %119 : vector<10x128xf32>
    %cst_61 = arith.constant 4.471500e-02 : f32
    %122 = vector.broadcast %cst_61 : f32 to vector<10x128xf32>
    %123 = arith.mulf %122, %119 : vector<10x128xf32>
    %124 = arith.mulf %123, %119 : vector<10x128xf32>
    %125 = arith.mulf %124, %119 : vector<10x128xf32>
    %126 = arith.addf %119, %125 : vector<10x128xf32>
    %cst_62 = arith.constant 0.797884583 : f32
    %127 = vector.broadcast %cst_62 : f32 to vector<10x128xf32>
    %128 = arith.mulf %127, %126 : vector<10x128xf32>
    %129 = math.tanh %128 : vector<10x128xf32>
    %cst_63 = arith.constant 1.000000e+00 : f32
    %130 = vector.broadcast %cst_63 : f32 to vector<10x128xf32>
    %131 = arith.addf %130, %129 : vector<10x128xf32>
    %132 = arith.mulf %121, %131 : vector<10x128xf32>
    %c0_64 = arith.constant 0 : index
    %c0_65 = arith.constant 0 : index
    %c0_66 = arith.constant 0 : index
    %133 = vector.load %arg12[%c0_64, %c0_65, %c0_66] : memref<2x128x32xf32, #tpu.memory_space<vmem>>, vector<1x128x32xf32>
    %134 = vector.shape_cast %133 : vector<1x128x32xf32> to vector<128x32xf32>
    %cst_67 = arith.constant dense<0.000000e+00> : vector<10x32xf32>
    %135 = tpu.matmul %132, %134, %cst_67 {dimension_numbers = #tpu.dot_dimension_numbers<[1], [0], [0], [1], [0, 0, 1, 1], [], []>} : vector<10x128xf32>, vector<128x32xf32>, vector<10x32xf32> -> vector<10x32xf32>
    %136 = arith.addf %84, %135 : vector<10x32xf32>
    %c0_68 = arith.constant 0 : index
    %c0_69 = arith.constant 0 : index
    %c0_70 = arith.constant 0 : index
    %137 = vector.load %arg13[%c0_68, %c0_69, %c0_70] : memref<2x1x32xf32, #tpu.memory_space<vmem>>, vector<1x1x32xf32>
    %138 = vector.shape_cast %137 : vector<1x1x32xf32> to vector<1x32xf32>
    %139 = vector.broadcast %138 : vector<1x32xf32> to vector<10x32xf32>
    %140 = arith.addf %136, %139 : vector<10x32xf32>
    %c1_71 = arith.constant 1 : index
    %c0_72 = arith.constant 0 : index
    %c0_73 = arith.constant 0 : index
    %c0_74 = arith.constant 0 : index
    %141 = vector.load %arg5[%c1_71, %c0_72, %c0_73, %c0_74] : memref<2x4x1x32xf32, #tpu.memory_space<vmem>>, vector<1x1x1x32xf32>
    %142 = vector.shape_cast %141 : vector<1x1x1x32xf32> to vector<1x32xf32>
    %c1_75 = arith.constant 1 : index
    %c1_76 = arith.constant 1 : index
    %c0_77 = arith.constant 0 : index
    %c0_78 = arith.constant 0 : index
    %143 = vector.load %arg5[%c1_75, %c1_76, %c0_77, %c0_78] : memref<2x4x1x32xf32, #tpu.memory_space<vmem>>, vector<1x1x1x32xf32>
    %144 = vector.shape_cast %143 : vector<1x1x1x32xf32> to vector<1x32xf32>
    %cst_79 = arith.constant dense<0.000000e+00> : vector<10xf32>
    %145 = vector.multi_reduction <add>, %140, %cst_79 [1] : vector<10x32xf32> to vector<10xf32>
    %146 = vector.shape_cast %145 : vector<10xf32> to vector<10x1xf32>
    %cst_80 = arith.constant 3.200000e+01 : f32
    %147 = vector.broadcast %cst_80 : f32 to vector<10x1xf32>
    %148 = arith.divf %146, %147 : vector<10x1xf32>
    %149 = vector.broadcast %148 : vector<10x1xf32> to vector<10x32xf32>
    %150 = arith.subf %140, %149 : vector<10x32xf32>
    %151 = vector.broadcast %148 : vector<10x1xf32> to vector<10x32xf32>
    %152 = arith.subf %140, %151 : vector<10x32xf32>
    %153 = arith.mulf %150, %152 : vector<10x32xf32>
    %cst_81 = arith.constant dense<0.000000e+00> : vector<10xf32>
    %154 = vector.multi_reduction <add>, %153, %cst_81 [1] : vector<10x32xf32> to vector<10xf32>
    %155 = vector.shape_cast %154 : vector<10xf32> to vector<10x1xf32>
    %cst_82 = arith.constant 3.200000e+01 : f32
    %156 = vector.broadcast %cst_82 : f32 to vector<10x1xf32>
    %157 = arith.divf %155, %156 : vector<10x1xf32>
    %cst_83 = arith.constant 9.99999996E-13 : f32
    %158 = vector.broadcast %cst_83 : f32 to vector<10x1xf32>
    %159 = arith.addf %157, %158 : vector<10x1xf32>
    %160 = math.rsqrt %159 : vector<10x1xf32>
    %161 = vector.broadcast %148 : vector<10x1xf32> to vector<10x32xf32>
    %162 = arith.subf %140, %161 : vector<10x32xf32>
    %163 = vector.broadcast %160 : vector<10x1xf32> to vector<10x32xf32>
    %164 = arith.mulf %162, %163 : vector<10x32xf32>
    %165 = vector.broadcast %142 : vector<1x32xf32> to vector<10x32xf32>
    %166 = arith.mulf %164, %165 : vector<10x32xf32>
    %167 = vector.broadcast %144 : vector<1x32xf32> to vector<10x32xf32>
    %168 = arith.addf %166, %167 : vector<10x32xf32>
    %c1_84 = arith.constant 1 : index
    %c0_85 = arith.constant 0 : index
    %c0_86 = arith.constant 0 : index
    %169 = vector.load %arg6[%c1_84, %c0_85, %c0_86] : memref<2x32x96xf32, #tpu.memory_space<vmem>>, vector<1x32x96xf32>
    %170 = vector.shape_cast %169 : vector<1x32x96xf32> to vector<32x96xf32>
    %cst_87 = arith.constant dense<0.000000e+00> : vector<10x96xf32>
    %171 = tpu.matmul %168, %170, %cst_87 {dimension_numbers = #tpu.dot_dimension_numbers<[1], [0], [0], [1], [0, 0, 1, 1], [], []>} : vector<10x32xf32>, vector<32x96xf32>, vector<10x96xf32> -> vector<10x96xf32>
    %c1_88 = arith.constant 1 : index
    %c0_89 = arith.constant 0 : index
    %c0_90 = arith.constant 0 : index
    %172 = vector.load %arg7[%c1_88, %c0_89, %c0_90] : memref<2x1x96xf32, #tpu.memory_space<vmem>>, vector<1x1x96xf32>
    %173 = vector.shape_cast %172 : vector<1x1x96xf32> to vector<1x96xf32>
    %174 = vector.broadcast %173 : vector<1x96xf32> to vector<10x96xf32>
    %175 = arith.addf %171, %174 : vector<10x96xf32>
    %c1_91 = arith.constant 1 : index
    %c0_92 = arith.constant 0 : index
    %c0_93 = arith.constant 0 : index
    %176 = vector.load %arg8[%c1_91, %c0_92, %c0_93] : memref<2x32x32xf32, #tpu.memory_space<vmem>>, vector<1x32x32xf32>
    %177 = vector.shape_cast %176 : vector<1x32x32xf32> to vector<32x32xf32>
    %c1_94 = arith.constant 1 : index
    %c0_95 = arith.constant 0 : index
    %c0_96 = arith.constant 0 : index
    %178 = vector.load %arg9[%c1_94, %c0_95, %c0_96] : memref<2x1x32xf32, #tpu.memory_space<vmem>>, vector<1x1x32xf32>
    %179 = vector.shape_cast %178 : vector<1x1x32xf32> to vector<1x32xf32>
    %180 = vector.extract_strided_slice %175 {offsets = [0, 0], sizes = [10, 16], strides = [1, 1]} : vector<10x96xf32> to vector<10x16xf32>
    %181 = vector.extract_strided_slice %175 {offsets = [0, 32], sizes = [10, 16], strides = [1, 1]} : vector<10x96xf32> to vector<10x16xf32>
    %182 = vector.extract_strided_slice %175 {offsets = [0, 64], sizes = [10, 16], strides = [1, 1]} : vector<10x96xf32> to vector<10x16xf32>
    %cst_97 = arith.constant dense<0.000000e+00> : vector<10x10xf32>
    %183 = tpu.matmul %180, %181, %cst_97 {dimension_numbers = #tpu.dot_dimension_numbers<[1], [1], [0], [0], [0, 0, 1, 0], [], []>} : vector<10x16xf32>, vector<10x16xf32>, vector<10x10xf32> -> vector<10x10xf32>
    %184 = arith.addf %183, %5 : vector<10x10xf32>
    %cst_98 = arith.constant dense<0xFF800000> : vector<10xf32>
    %185 = vector.multi_reduction <maximumf>, %184, %cst_98 [1] : vector<10x10xf32> to vector<10xf32>
    %186 = vector.shape_cast %185 : vector<10xf32> to vector<10x1xf32>
    %187 = vector.broadcast %186 : vector<10x1xf32> to vector<10x10xf32>
    %188 = arith.subf %184, %187 : vector<10x10xf32>
    %189 = math.exp %188 : vector<10x10xf32>
    %cst_99 = arith.constant dense<0.000000e+00> : vector<10xf32>
    %190 = vector.multi_reduction <add>, %189, %cst_99 [1] : vector<10x10xf32> to vector<10xf32>
    %191 = vector.shape_cast %190 : vector<10xf32> to vector<10x1xf32>
    %192 = tpu.reciprocal %191 {approx = true} : vector<10x1xf32> -> vector<10x1xf32>
    %193 = vector.broadcast %192 : vector<10x1xf32> to vector<10x10xf32>
    %194 = arith.mulf %189, %193 : vector<10x10xf32>
    %cst_100 = arith.constant dense<0.000000e+00> : vector<10x16xf32>
    %195 = tpu.matmul %194, %182, %cst_100 {dimension_numbers = #tpu.dot_dimension_numbers<[1], [0], [0], [1], [0, 0, 1, 1], [], []>} : vector<10x10xf32>, vector<10x16xf32>, vector<10x16xf32> -> vector<10x16xf32>
    %196 = vector.extract_strided_slice %177 {offsets = [0, 0], sizes = [16, 32], strides = [1, 1]} : vector<32x32xf32> to vector<16x32xf32>
    %cst_101 = arith.constant dense<0.000000e+00> : vector<10x32xf32>
    %197 = tpu.matmul %195, %196, %cst_101 {dimension_numbers = #tpu.dot_dimension_numbers<[1], [0], [0], [1], [0, 0, 1, 1], [], []>} : vector<10x16xf32>, vector<16x32xf32>, vector<10x32xf32> -> vector<10x32xf32>
    %198 = vector.broadcast %179 : vector<1x32xf32> to vector<10x32xf32>
    %199 = arith.addf %198, %197 : vector<10x32xf32>
    %200 = vector.extract_strided_slice %175 {offsets = [0, 16], sizes = [10, 16], strides = [1, 1]} : vector<10x96xf32> to vector<10x16xf32>
    %201 = vector.extract_strided_slice %175 {offsets = [0, 48], sizes = [10, 16], strides = [1, 1]} : vector<10x96xf32> to vector<10x16xf32>
    %202 = vector.extract_strided_slice %175 {offsets = [0, 80], sizes = [10, 16], strides = [1, 1]} : vector<10x96xf32> to vector<10x16xf32>
    %cst_102 = arith.constant dense<0.000000e+00> : vector<10x10xf32>
    %203 = tpu.matmul %200, %201, %cst_102 {dimension_numbers = #tpu.dot_dimension_numbers<[1], [1], [0], [0], [0, 0, 1, 0], [], []>} : vector<10x16xf32>, vector<10x16xf32>, vector<10x10xf32> -> vector<10x10xf32>
    %204 = arith.addf %203, %5 : vector<10x10xf32>
    %cst_103 = arith.constant dense<0xFF800000> : vector<10xf32>
    %205 = vector.multi_reduction <maximumf>, %204, %cst_103 [1] : vector<10x10xf32> to vector<10xf32>
    %206 = vector.shape_cast %205 : vector<10xf32> to vector<10x1xf32>
    %207 = vector.broadcast %206 : vector<10x1xf32> to vector<10x10xf32>
    %208 = arith.subf %204, %207 : vector<10x10xf32>
    %209 = math.exp %208 : vector<10x10xf32>
    %cst_104 = arith.constant dense<0.000000e+00> : vector<10xf32>
    %210 = vector.multi_reduction <add>, %209, %cst_104 [1] : vector<10x10xf32> to vector<10xf32>
    %211 = vector.shape_cast %210 : vector<10xf32> to vector<10x1xf32>
    %212 = tpu.reciprocal %211 {approx = true} : vector<10x1xf32> -> vector<10x1xf32>
    %213 = vector.broadcast %212 : vector<10x1xf32> to vector<10x10xf32>
    %214 = arith.mulf %209, %213 : vector<10x10xf32>
    %cst_105 = arith.constant dense<0.000000e+00> : vector<10x16xf32>
    %215 = tpu.matmul %214, %202, %cst_105 {dimension_numbers = #tpu.dot_dimension_numbers<[1], [0], [0], [1], [0, 0, 1, 1], [], []>} : vector<10x10xf32>, vector<10x16xf32>, vector<10x16xf32> -> vector<10x16xf32>
    %216 = vector.extract_strided_slice %177 {offsets = [16, 0], sizes = [16, 32], strides = [1, 1]} : vector<32x32xf32> to vector<16x32xf32>
    %cst_106 = arith.constant dense<0.000000e+00> : vector<10x32xf32>
    %217 = tpu.matmul %215, %216, %cst_106 {dimension_numbers = #tpu.dot_dimension_numbers<[1], [0], [0], [1], [0, 0, 1, 1], [], []>} : vector<10x16xf32>, vector<16x32xf32>, vector<10x32xf32> -> vector<10x32xf32>
    %218 = arith.addf %199, %217 : vector<10x32xf32>
    %219 = arith.addf %140, %218 : vector<10x32xf32>
    %c1_107 = arith.constant 1 : index
    %c2_108 = arith.constant 2 : index
    %c0_109 = arith.constant 0 : index
    %c0_110 = arith.constant 0 : index
    %220 = vector.load %arg5[%c1_107, %c2_108, %c0_109, %c0_110] : memref<2x4x1x32xf32, #tpu.memory_space<vmem>>, vector<1x1x1x32xf32>
    %221 = vector.shape_cast %220 : vector<1x1x1x32xf32> to vector<1x32xf32>
    %c1_111 = arith.constant 1 : index
    %c3_112 = arith.constant 3 : index
    %c0_113 = arith.constant 0 : index
    %c0_114 = arith.constant 0 : index
    %222 = vector.load %arg5[%c1_111, %c3_112, %c0_113, %c0_114] : memref<2x4x1x32xf32, #tpu.memory_space<vmem>>, vector<1x1x1x32xf32>
    %223 = vector.shape_cast %222 : vector<1x1x1x32xf32> to vector<1x32xf32>
    %cst_115 = arith.constant dense<0.000000e+00> : vector<10xf32>
    %224 = vector.multi_reduction <add>, %219, %cst_115 [1] : vector<10x32xf32> to vector<10xf32>
    %225 = vector.shape_cast %224 : vector<10xf32> to vector<10x1xf32>
    %cst_116 = arith.constant 3.200000e+01 : f32
    %226 = vector.broadcast %cst_116 : f32 to vector<10x1xf32>
    %227 = arith.divf %225, %226 : vector<10x1xf32>
    %228 = vector.broadcast %227 : vector<10x1xf32> to vector<10x32xf32>
    %229 = arith.subf %219, %228 : vector<10x32xf32>
    %230 = vector.broadcast %227 : vector<10x1xf32> to vector<10x32xf32>
    %231 = arith.subf %219, %230 : vector<10x32xf32>
    %232 = arith.mulf %229, %231 : vector<10x32xf32>
    %cst_117 = arith.constant dense<0.000000e+00> : vector<10xf32>
    %233 = vector.multi_reduction <add>, %232, %cst_117 [1] : vector<10x32xf32> to vector<10xf32>
    %234 = vector.shape_cast %233 : vector<10xf32> to vector<10x1xf32>
    %cst_118 = arith.constant 3.200000e+01 : f32
    %235 = vector.broadcast %cst_118 : f32 to vector<10x1xf32>
    %236 = arith.divf %234, %235 : vector<10x1xf32>
    %cst_119 = arith.constant 9.99999996E-13 : f32
    %237 = vector.broadcast %cst_119 : f32 to vector<10x1xf32>
    %238 = arith.addf %236, %237 : vector<10x1xf32>
    %239 = math.rsqrt %238 : vector<10x1xf32>
    %240 = vector.broadcast %227 : vector<10x1xf32> to vector<10x32xf32>
    %241 = arith.subf %219, %240 : vector<10x32xf32>
    %242 = vector.broadcast %239 : vector<10x1xf32> to vector<10x32xf32>
    %243 = arith.mulf %241, %242 : vector<10x32xf32>
    %244 = vector.broadcast %221 : vector<1x32xf32> to vector<10x32xf32>
    %245 = arith.mulf %243, %244 : vector<10x32xf32>
    %246 = vector.broadcast %223 : vector<1x32xf32> to vector<10x32xf32>
    %247 = arith.addf %245, %246 : vector<10x32xf32>
    %c1_120 = arith.constant 1 : index
    %c0_121 = arith.constant 0 : index
    %c0_122 = arith.constant 0 : index
    %248 = vector.load %arg10[%c1_120, %c0_121, %c0_122] : memref<2x32x128xf32, #tpu.memory_space<vmem>>, vector<1x32x128xf32>
    %249 = vector.shape_cast %248 : vector<1x32x128xf32> to vector<32x128xf32>
    %cst_123 = arith.constant dense<0.000000e+00> : vector<10x128xf32>
    %250 = tpu.matmul %247, %249, %cst_123 {dimension_numbers = #tpu.dot_dimension_numbers<[1], [0], [0], [1], [0, 0, 1, 1], [], []>} : vector<10x32xf32>, vector<32x128xf32>, vector<10x128xf32> -> vector<10x128xf32>
    %c1_124 = arith.constant 1 : index
    %c0_125 = arith.constant 0 : index
    %c0_126 = arith.constant 0 : index
    %251 = vector.load %arg11[%c1_124, %c0_125, %c0_126] : memref<2x1x128xf32, #tpu.memory_space<vmem>>, vector<1x1x128xf32>
    %252 = vector.shape_cast %251 : vector<1x1x128xf32> to vector<1x128xf32>
    %253 = vector.broadcast %252 : vector<1x128xf32> to vector<10x128xf32>
    %254 = arith.addf %250, %253 : vector<10x128xf32>
    %cst_127 = arith.constant 5.000000e-01 : f32
    %255 = vector.broadcast %cst_127 : f32 to vector<10x128xf32>
    %256 = arith.mulf %255, %254 : vector<10x128xf32>
    %cst_128 = arith.constant 4.471500e-02 : f32
    %257 = vector.broadcast %cst_128 : f32 to vector<10x128xf32>
    %258 = arith.mulf %257, %254 : vector<10x128xf32>
    %259 = arith.mulf %258, %254 : vector<10x128xf32>
    %260 = arith.mulf %259, %254 : vector<10x128xf32>
    %261 = arith.addf %254, %260 : vector<10x128xf32>
    %cst_129 = arith.constant 0.797884583 : f32
    %262 = vector.broadcast %cst_129 : f32 to vector<10x128xf32>
    %263 = arith.mulf %262, %261 : vector<10x128xf32>
    %264 = math.tanh %263 : vector<10x128xf32>
    %cst_130 = arith.constant 1.000000e+00 : f32
    %265 = vector.broadcast %cst_130 : f32 to vector<10x128xf32>
    %266 = arith.addf %265, %264 : vector<10x128xf32>
    %267 = arith.mulf %256, %266 : vector<10x128xf32>
    %c1_131 = arith.constant 1 : index
    %c0_132 = arith.constant 0 : index
    %c0_133 = arith.constant 0 : index
    %268 = vector.load %arg12[%c1_131, %c0_132, %c0_133] : memref<2x128x32xf32, #tpu.memory_space<vmem>>, vector<1x128x32xf32>
    %269 = vector.shape_cast %268 : vector<1x128x32xf32> to vector<128x32xf32>
    %cst_134 = arith.constant dense<0.000000e+00> : vector<10x32xf32>
    %270 = tpu.matmul %267, %269, %cst_134 {dimension_numbers = #tpu.dot_dimension_numbers<[1], [0], [0], [1], [0, 0, 1, 1], [], []>} : vector<10x128xf32>, vector<128x32xf32>, vector<10x32xf32> -> vector<10x32xf32>
    %271 = arith.addf %219, %270 : vector<10x32xf32>
    %c1_135 = arith.constant 1 : index
    %c0_136 = arith.constant 0 : index
    %c0_137 = arith.constant 0 : index
    %272 = vector.load %arg13[%c1_135, %c0_136, %c0_137] : memref<2x1x32xf32, #tpu.memory_space<vmem>>, vector<1x1x32xf32>
    %273 = vector.shape_cast %272 : vector<1x1x32xf32> to vector<1x32xf32>
    %274 = vector.broadcast %273 : vector<1x32xf32> to vector<10x32xf32>
    %275 = arith.addf %271, %274 : vector<10x32xf32>
    %c0_138 = arith.constant 0 : index
    %c0_139 = arith.constant 0 : index
    %276 = vector.load %arg4[%c0_138, %c0_139] : memref<2x10xf32, #tpu.memory_space<vmem>>, vector<2x10xf32>
    %cst_140 = arith.constant dense<0.000000e+00> : vector<2x32xf32>
    %277 = tpu.matmul %276, %275, %cst_140 {dimension_numbers = #tpu.dot_dimension_numbers<[1], [0], [0], [1], [0, 0, 1, 1], [], []>} : vector<2x10xf32>, vector<10x32xf32>, vector<2x32xf32> -> vector<2x32xf32>
    %c0_141 = arith.constant 0 : index
    %c0_142 = arith.constant 0 : index
    %c0_143 = arith.constant 0 : index
    %278 = vector.load %arg14[%c0_141, %c0_142, %c0_143] : memref<2x1x32xf32, #tpu.memory_space<vmem>>, vector<1x1x32xf32>
    %279 = vector.shape_cast %278 : vector<1x1x32xf32> to vector<1x32xf32>
    %c1_144 = arith.constant 1 : index
    %c0_145 = arith.constant 0 : index
    %c0_146 = arith.constant 0 : index
    %280 = vector.load %arg14[%c1_144, %c0_145, %c0_146] : memref<2x1x32xf32, #tpu.memory_space<vmem>>, vector<1x1x32xf32>
    %281 = vector.shape_cast %280 : vector<1x1x32xf32> to vector<1x32xf32>
    %cst_147 = arith.constant dense<0.000000e+00> : vector<2xf32>
    %282 = vector.multi_reduction <add>, %277, %cst_147 [1] : vector<2x32xf32> to vector<2xf32>
    %283 = vector.shape_cast %282 : vector<2xf32> to vector<2x1xf32>
    %cst_148 = arith.constant 3.200000e+01 : f32
    %284 = vector.broadcast %cst_148 : f32 to vector<2x1xf32>
    %285 = arith.divf %283, %284 : vector<2x1xf32>
    %286 = vector.broadcast %285 : vector<2x1xf32> to vector<2x32xf32>
    %287 = arith.subf %277, %286 : vector<2x32xf32>
    %288 = vector.broadcast %285 : vector<2x1xf32> to vector<2x32xf32>
    %289 = arith.subf %277, %288 : vector<2x32xf32>
    %290 = arith.mulf %287, %289 : vector<2x32xf32>
    %cst_149 = arith.constant dense<0.000000e+00> : vector<2xf32>
    %291 = vector.multi_reduction <add>, %290, %cst_149 [1] : vector<2x32xf32> to vector<2xf32>
    %292 = vector.shape_cast %291 : vector<2xf32> to vector<2x1xf32>
    %cst_150 = arith.constant 3.200000e+01 : f32
    %293 = vector.broadcast %cst_150 : f32 to vector<2x1xf32>
    %294 = arith.divf %292, %293 : vector<2x1xf32>
    %cst_151 = arith.constant 9.99999996E-13 : f32
    %295 = vector.broadcast %cst_151 : f32 to vector<2x1xf32>
    %296 = arith.addf %294, %295 : vector<2x1xf32>
    %297 = math.rsqrt %296 : vector<2x1xf32>
    %298 = vector.broadcast %285 : vector<2x1xf32> to vector<2x32xf32>
    %299 = arith.subf %277, %298 : vector<2x32xf32>
    %300 = vector.broadcast %297 : vector<2x1xf32> to vector<2x32xf32>
    %301 = arith.mulf %299, %300 : vector<2x32xf32>
    %302 = vector.broadcast %279 : vector<1x32xf32> to vector<2x32xf32>
    %303 = arith.mulf %301, %302 : vector<2x32xf32>
    %304 = vector.broadcast %281 : vector<1x32xf32> to vector<2x32xf32>
    %305 = arith.addf %303, %304 : vector<2x32xf32>
    %c0_152 = arith.constant 0 : index
    %c0_153 = arith.constant 0 : index
    %306 = vector.load %arg15[%c0_152, %c0_153] : memref<2x32xf32, #tpu.memory_space<vmem>>, vector<2x32xf32>
    tpu.vector_store %arg15[%c0_152, %c0_153], %305 {strides = array<i32>} : memref<2x32xf32, #tpu.memory_space<vmem>>, vector<2x32xf32>,
    return
  }
}

</mosaic_0001>

<llo_original>
// kernel: phikon_forward.1
$region0: #{phikon_forward.1}
  #allocation0 [shape = 'u32[]', space=smem, size = 0x4, offset = 0x4, fixed_abs, tag = 'smem constant byte address 0x4 - core index']
  #allocation1 [shape = 'u32[144,128]{1,0:T(1,128)}', space=vmem, size = 0x12000, scoped, tag = 'internal scratch']
  %s0 = inlined_call_operand.vmem [shape: f32[10,256], index: 0, kind: input, shape index: {}]
  %s1 = inlined_call_operand.vmem [shape: f32[256,32], index: 1, kind: input, shape index: {}]
  %s2 = inlined_call_operand.vmem [shape: f32[10,32], index: 2, kind: input, shape index: {}]
  %s3 = inlined_call_operand.vmem [shape: f32[10,10], index: 3, kind: input, shape index: {}]
  %s4 = inlined_call_operand.vmem [shape: f32[2,10], index: 4, kind: input, shape index: {}]
  %s5 = inlined_call_operand.vmem [shape: f32[2,4,1,32], index: 5, kind: input, shape index: {}]
  %s6 = inlined_call_operand.vmem [shape: f32[2,32,96], index: 6, kind: input, shape index: {}]
  %s7 = inlined_call_operand.vmem [shape: f32[2,1,96], index: 7, kind: input, shape index: {}]
  %s8 = inlined_call_operand.vmem [shape: f32[2,32,32], index: 8, kind: input, shape index: {}]
  %s9 = inlined_call_operand.vmem [shape: f32[2,1,32], index: 9, kind: input, shape index: {}]
  %s10 = inlined_call_operand.vmem [shape: f32[2,32,128], index: 10, kind: input, shape index: {}]
  %s11 = inlined_call_operand.vmem [shape: f32[2,1,128], index: 11, kind: input, shape index: {}]
  %s12 = inlined_call_operand.vmem [shape: f32[2,128,32], index: 12, kind: input, shape index: {}]
  %s13 = inlined_call_operand.vmem [shape: f32[2,1,32], index: 13, kind: input, shape index: {}]
  %s14 = inlined_call_operand.vmem [shape: f32[2,1,32], index: 14, kind: input, shape index: {}]
  %s15 = inlined_call_operand.hbm [shape: f32[2,32], index: 15, kind: output, shape index: {}]
  %s16 = sld [smem:[#allocation0]]
  $region70: #{phikon_forward.1} parent=0
    _
  %s18 = ssub.s32 1, %s16
  %s19 = scalar_select 0, %s18, %s16
  $region1: #{phikon_forward.1} parent=0
    #allocation2 [shape = 'u8[1024]{0}', space=vmem, size = 0x400, scoped, tag = 'output window, operand 0, single buffered']
    #allocation3 [shape = 's32[1]{0}', space=sflag, size = 0x4, scoped, tag = 'scoped memory for phikon_forward.1']
    %20 = vsyncpa [#allocation3], 0
    // Predicated region
    $region2: #{phikon_forward.1} parent=1 // pred_check
      _
    $region3: #{phikon_forward.1} parent=1 // pred_check_branch
      %22 = sbr.rel (0) target = $region5
    $region4: #{phikon_forward.1} parent=1 // pred_region
      _
    $region5: #{phikon_forward.1} parent=1 // pred_fallthru
      _
    // Predicated region
    $region6: #{phikon_forward.1} parent=1 // pred_check
      _
    $region7: #{phikon_forward.1} parent=1 // pred_check_branch
      %24 = sbr.rel (0) target = $region9
    $region8: #{phikon_forward.1} parent=1 // pred_region
      _
    $region9: #{phikon_forward.1} parent=1 // pred_fallthru
      _
    // Predicated region
    $region10: #{phikon_forward.1} parent=1 // pred_check
      _
    $region11: #{phikon_forward.1} parent=1 // pred_check_branch
      %26 = sbr.rel (0) target = $region13
    $region12: #{phikon_forward.1} parent=1 // pred_region
      _
    $region13: #{phikon_forward.1} parent=1 // pred_fallthru
      _
    // Predicated region
    $region14: #{phikon_forward.1} parent=1 // pred_check
      _
    $region15: #{phikon_forward.1} parent=1 // pred_check_branch
      %28 = sbr.rel (0) target = $region17
    $region16: #{phikon_forward.1} parent=1 // pred_region
      _
    $region17: #{phikon_forward.1} parent=1 // pred_fallthru
      _
    // Predicated region
    $region18: #{phikon_forward.1} parent=1 // pred_check
      _
    $region19: #{phikon_forward.1} parent=1 // pred_check_branch
      %30 = sbr.rel (0) target = $region21
    $region20: #{phikon_forward.1} parent=1 // pred_region
      _
    $region21: #{phikon_forward.1} parent=1 // pred_fallthru
      _
    // Predicated region
    $region22: #{phikon_forward.1} parent=1 // pred_check
      _
    $region23: #{phikon_forward.1} parent=1 // pred_check_branch
      %32 = sbr.rel (0) target = $region25
    $region24: #{phikon_forward.1} parent=1 // pred_region
      _
    $region25: #{phikon_forward.1} parent=1 // pred_fallthru
      _
    // Predicated region
    $region26: #{phikon_forward.1} parent=1 // pred_check
      _
    $region27: #{phikon_forward.1} parent=1 // pred_check_branch
      %34 = sbr.rel (0) target = $region29
    $region28: #{phikon_forward.1} parent=1 // pred_region
      _
    $region29: #{phikon_forward.1} parent=1 // pred_fallthru
      _
    // Predicated region
    $region30: #{phikon_forward.1} parent=1 // pred_check
      _
    $region31: #{phikon_forward.1} parent=1 // pred_check_branch
      %36 = sbr.rel (0) target = $region33
    $region32: #{phikon_forward.1} parent=1 // pred_region
      _
    $region33: #{phikon_forward.1} parent=1 // pred_fallthru
      _
    // Predicated region
    $region34: #{phikon_forward.1} parent=1 // pred_check
      _
    $region35: #{phikon_forward.1} parent=1 // pred_check_branch
      %38 = sbr.rel (0) target = $region37
    $region36: #{phikon_forward.1} parent=1 // pred_region
      _
    $region37: #{phikon_forward.1} parent=1 // pred_fallthru
      _
    // Predicated region
    $region38: #{phikon_forward.1} parent=1 // pred_check
      _
    $region39: #{phikon_forward.1} parent=1 // pred_check_branch
      %40 = sbr.rel (0) target = $region41
    $region40: #{phikon_forward.1} parent=1 // pred_region
      _
    $region41: #{phikon_forward.1} parent=1 // pred_fallthru
      _
    // Predicated region
    $region42: #{phikon_forward.1} parent=1 // pred_check
      _
    $region43: #{phikon_forward.1} parent=1 // pred_check_branch
      %42 = sbr.rel (0) target = $region45
    $region44: #{phikon_forward.1} parent=1 // pred_region
      _
    $region45: #{phikon_forward.1} parent=1 // pred_fallthru
      _
    // Predicated region
    $region46: #{phikon_forward.1} parent=1 // pred_check
      _
    $region47: #{phikon_forward.1} parent=1 // pred_check_branch
      %44 = sbr.rel (0) target = $region49
    $region48: #{phikon_forward.1} parent=1 // pred_region
      _
    $region49: #{phikon_forward.1} parent=1 // pred_fallthru
      _
    // Predicated region
    $region50: #{phikon_forward.1} parent=1 // pred_check
      _
    $region51: #{phikon_forward.1} parent=1 // pred_check_branch
      %46 = sbr.rel (0) target = $region53
    $region52: #{phikon_forward.1} parent=1 // pred_region
      _
    $region53: #{phikon_forward.1} parent=1 // pred_fallthru
      _
    // Predicated region
    $region54: #{phikon_forward.1} parent=1 // pred_check
      _
    $region55: #{phikon_forward.1} parent=1 // pred_check_branch
      %48 = sbr.rel (0) target = $region57
    $region56: #{phikon_forward.1} parent=1 // pred_region
      _
    $region57: #{phikon_forward.1} parent=1 // pred_fallthru
      _
    // Predicated region
    $region58: #{phikon_forward.1} parent=1 // pred_check
      _
    $region59: #{phikon_forward.1} parent=1 // pred_check_branch
      %50 = sbr.rel (0) target = $region61
    $region60: #{phikon_forward.1} parent=1 // pred_region
      _
    $region61: #{phikon_forward.1} parent=1 // pred_fallthru
      _
    %v51 = vld [vmem:[%s0] sm:$0xff]
    %v52 = vld [vmem:[%s0 + $0x8] sm:$0xff]
    %v53 = vld [vmem:[%s0 + $0x10] sm:$0x3]
    %v54 = vld [vmem:[%s0 + $0x18] sm:$0x3]
    %v55 = vld [vmem:[%s1] sm:$0xff]
    %v56 = vld [vmem:[%s1 + $0x8] sm:$0xff]
    %v57 = vld [vmem:[%s1 + $0x10] sm:$0xff]
    %v58 = vld [vmem:[%s1 + $0x18] sm:$0xff]
    %v59 = vld [vmem:[%s1 + $0x20] sm:$0xff]
    %v60 = vld [vmem:[%s1 + $0x28] sm:$0xff]
    %v61 = vld [vmem:[%s1 + $0x30] sm:$0xff]
    %v62 = vld [vmem:[%s1 + $0x38] sm:$0xff]
    %v63 = vld [vmem:[%s1 + $0x40] sm:$0xff]
    %v64 = vld [vmem:[%s1 + $0x48] sm:$0xff]
    %v65 = vld [vmem:[%s1 + $0x50] sm:$0xff]
    %v66 = vld [vmem:[%s1 + $0x58] sm:$0xff]
    %v67 = vld [vmem:[%s1 + $0x60] sm:$0xff]
    %v68 = vld [vmem:[%s1 + $0x68] sm:$0xff]
    %v69 = vld [vmem:[%s1 + $0x70] sm:$0xff]
    %v70 = vld [vmem:[%s1 + $0x78] sm:$0xff]
    %v71 = vld [vmem:[%s1 + $0x80] sm:$0xff]
    %v72 = vld [vmem:[%s1 + $0x88] sm:$0xff]
    %v73 = vld [vmem:[%s1 + $0x90] sm:$0xff]
    %v74 = vld [vmem:[%s1 + $0x98] sm:$0xff]
    %v75 = vld [vmem:[%s1 + $0xa0] sm:$0xff]
    %v76 = vld [vmem:[%s1 + $0xa8] sm:$0xff]
    %v77 = vld [vmem:[%s1 + $0xb0] sm:$0xff]
    %v78 = vld [vmem:[%s1 + $0xb8] sm:$0xff]
    %v79 = vld [vmem:[%s1 + $0xc0] sm:$0xff]
    %v80 = vld [vmem:[%s1 + $0xc8] sm:$0xff]
    %v81 = vld [vmem:[%s1 + $0xd0] sm:$0xff]
    %v82 = vld [vmem:[%s1 + $0xd8] sm:$0xff]
    %v83 = vld [vmem:[%s1 + $0xe0] sm:$0xff]
    %v84 = vld [vmem:[%s1 + $0xe8] sm:$0xff]
    %v85 = vld [vmem:[%s1 + $0xf0] sm:$0xff]
    %v86 = vld [vmem:[%s1 + $0xf8] sm:$0xff]
    %v87 = vld [vmem:[%s2] sm:$0xff]
    %v88 = vld [vmem:[%s2 + $0x8] sm:$0x3]
    %89 = vmatprep.subr.mxu0 0.0
    %90 = vmatpush1.msra.mxu0 %v55
    %91 = vmatprep.subr.mxu0 0.0
    %92 = vmatpush1.msra.mxu0 %v56
    %93 = vmatprep.subr.mxu0 0.0
    %94 = vmatpush1.msra.mxu0 %v57
    %95 = vmatprep.subr.mxu0 0.0
    %96 = vmatpush1.msra.mxu0 %v58
    %97 = vmatprep.subr.mxu0 0.0
    %98 = vmatpush1.msra.mxu0 %v59
    %99 = vmatprep.subr.mxu0 0.0
    %100 = vmatpush1.msra.mxu0 %v60
    %101 = vmatprep.subr.mxu0 0.0
    %102 = vmatpush1.msra.mxu0 %v61
    %103 = vmatprep.subr.mxu0 0.0
    %104 = vmatpush1.msra.mxu0 %v62
    %105 = vmatprep.subr.mxu0 0.0
    %106 = vmatpush1.msra.mxu0 %v63
    %107 = vmatprep.subr.mxu0 0.0
    %108 = vmatpush1.msra.mxu0 %v64
    %109 = vmatprep.subr.mxu0 0.0
    %110 = vmatpush1.msra.mxu0 %v65
    %111 = vmatprep.subr.mxu0 0.0
    %112 = vmatpush1.msra.mxu0 %v66
    %113 = vmatprep.subr.mxu0 0.0
    %114 = vmatpush1.msra.mxu0 %v67
    %115 = vmatprep.subr.mxu0 0.0
    %116 = vmatpush1.msra.mxu0 %v68
    %117 = vmatprep.subr.mxu0 0.0
    %118 = vmatpush1.msra.mxu0 %v69
    %119 = vmatprep.subr.mxu0 0.0
    %120 = vmatpush1.msra.mxu0 %v70
    %121 = vmatprep.subr.mxu0 0.0
    %122 = vmatpush1.msra.mxu0 %v71
    %123 = vmatprep.subr.mxu0 0.0
    %124 = vmatpush1.msra.mxu0 %v72
    %125 = vmatprep.subr.mxu0 0.0
    %126 = vmatpush1.msra.mxu0 %v73
    %127 = vmatprep.subr.mxu0 0.0
    %128 = vmatpush1.msra.mxu0 %v74
    %129 = vmatprep.subr.mxu0 0.0
    %130 = vmatpush1.msra.mxu0 %v75
    %131 = vmatprep.subr.mxu0 0.0
    %132 = vmatpush1.msra.mxu0 %v76
    %133 = vmatprep.subr.mxu0 0.0
    %134 = vmatpush1.msra.mxu0 %v77
    %135 = vmatprep.subr.mxu0 0.0
    %136 = vmatpush1.msra.mxu0 %v78
    %137 = vmatprep.subr.mxu0 0.0
    %138 = vmatpush1.msra.mxu0 %v79
    %139 = vmatprep.subr.mxu0 0.0
    %140 = vmatpush1.msra.mxu0 %v80
    %141 = vmatprep.subr.mxu0 0.0
    %142 = vmatpush1.msra.mxu0 %v81
    %143 = vmatprep.subr.mxu0 0.0
    %144 = vmatpush1.msra.mxu0 %v82
    %145 = vmatprep.subr.mxu0 0.0
    %146 = vmatpush1.msra.mxu0 %v83
    %147 = vmatprep.subr.mxu0 0.0
    %148 = vmatpush1.msra.mxu0 %v84
    %149 = vmatprep.subr.mxu0 0.0
    %150 = vmatpush1.msra.mxu0 %v85
    %151 = vmatprep.subr.mxu0 0.0
    %152 = vmatpush1.msra.mxu0 %v86
    %153 = vmatprep.mubr.f32.mxu0 %v52
    %154 = vmatmul.mubr.f32.gmra.mrb[0].mxu0 %v51
    %v155 = vpop.f32.mrb[0].mxu0
    %v156 = vadd.f32 %v87, %v155
    %v157 = vpop.f32.mrb[0].mxu0
    %158 = vmatprep.mubr.f32.mxu0 %v54
    %159 = vmatmul.mubr.f32.gmra.mrb[0].mxu0 %v53
    %v160 = vpop.f32.mrb[0].mxu0
    %v161 = vadd.f32 %v88, %v160
    %v162 = vpop.f32.mrb[0].mxu0
    %163 = vdwg.mxu0
    %v164 = vld [vmem:[%s3] sm:$0xff]
    %v165 = vld [vmem:[%s3 + $0x8] sm:$0x3]
    %v166 = vld [vmem:[%s5] sm:$0x1]
    %s167 = scalar_lea.vmem %s5, 1
    %v168 = vld [vmem:[%s167] sm:$0x1]
    %vm169 = vcmask 261120
    %v170 = vsel %vm169, %v156, 0.0
    %171 = vadd.xlane.f32.xlu0 %v170
    %v172 = vpop.xlane.xlu0 %171
    %vm173 = vcmask 254976
    %v174 = vsel %vm173, %v161, 0.0
    %175 = vadd.xlane.f32.xlu0 %v174
    %v176 = vpop.xlane.xlu0 %175
    %v177 = vrcp.pop 32.0
    %v178 = vmul.f32 %v172, %v177
    %v179 = vmul.f32 %v176, %v177
    %v180 = vsub.f32 %v156, %v178
    %v181 = vsub.f32 %v161, %v179
    %v182 = vmul.f32 %v180, %v180
    %v183 = vmul.f32 %v181, %v181
    %v184 = vsel %vm169, %v182, 0.0
    %185 = vadd.xlane.f32.xlu0 %v184
    %v186 = vpop.xlane.xlu0 %185
    %v187 = vsel %vm173, %v183, 0.0
    %188 = vadd.xlane.f32.xlu0 %v187
    %v189 = vpop.xlane.xlu0 %188
    %v190 = vmul.f32 %v186, %v177
    %v191 = vmul.f32 %v189, %v177
    %v192 = vadd.f32 %v190, 1e-12
    %v193 = vadd.f32 %v191, 1e-12
    %v194 = vrsqrt.pop %v192
    %v195 = vrsqrt.pop %v193
    %v196 = vmul.f32 %v180, %v194
    %v197 = vmul.f32 %v181, %v195
    %v199 = vlaneseq
    %v200 = vshrl.u32 %v199, 7
    %v201 = vsub.s32 0, %v200
    %v202 = vrot.slane %v166, %v201
    %v204 = vmul.f32 %v196, %v202
    %v205 = vmul.f32 %v197, %v202
    %v207 = vlaneseq
    %v208 = vshrl.u32 %v207, 7
    %v209 = vsub.s32 0, %v208
    %v210 = vrot.slane %v168, %v209
    %v212 = vadd.f32 %v204, %v210
    %v213 = vadd.f32 %v205, %v210
    %v214 = vld [vmem:[%s6] sm:$0xff]
    %v215 = vld [vmem:[%s6 + $0x8] sm:$0xff]
    %v216 = vld [vmem:[%s6 + $0x10] sm:$0xff]
    %v217 = vld [vmem:[%s6 + $0x18] sm:$0xff]
    %v218 = vld [vmem:[%s7] sm:$0x1]
    %v220 = vlaneseq
    %v221 = vshrl.u32 %v220, 7
    %v222 = vsub.s32 0, %v221
    %v223 = vrot.slane %v218, %v222
    %v226 = vsel %vm169, %v212, 0
    %v229 = vsel %vm169, %v213, 0
    %231 = vmatprep.subr.mxu0 0.0
    %232 = vmatpush1.msra.mxu0 %v214
    %233 = vmatprep.subr.mxu0 0.0
    %234 = vmatpush1.msra.mxu0 %v215
    %235 = vmatprep.subr.mxu0 0.0
    %236 = vmatpush1.msra.mxu0 %v216
    %237 = vmatprep.subr.mxu0 0.0
    %238 = vmatpush1.msra.mxu0 %v217
    %239 = vmatprep.subr.mxu0 0.0
    %240 = vmatpush1.msra.mxu0 0.0
    %241 = vmatprep.subr.mxu0 0.0
    %242 = vmatpush1.msra.mxu0 0.0
    %243 = vmatprep.subr.mxu0 0.0
    %244 = vmatpush1.msra.mxu0 0.0
    %245 = vmatprep.subr.mxu0 0.0
    %246 = vmatpush1.msra.mxu0 0.0
    %247 = vmatprep.subr.mxu0 0.0
    %248 = vmatpush1.msra.mxu0 0.0
    %249 = vmatprep.subr.mxu0 0.0
    %250 = vmatpush1.msra.mxu0 0.0
    %251 = vmatprep.subr.mxu0 0.0
    %252 = vmatpush1.msra.mxu0 0.0
    %253 = vmatprep.subr.mxu0 0.0
    %254 = vmatpush1.msra.mxu0 0.0
    %255 = vmatprep.subr.mxu0 0.0
    %256 = vmatpush1.msra.mxu0 0.0
    %257 = vmatprep.subr.mxu0 0.0
    %258 = vmatpush1.msra.mxu0 0.0
    %259 = vmatprep.subr.mxu0 0.0
    %260 = vmatpush1.msra.mxu0 0.0
    %261 = vmatprep.subr.mxu0 0.0
    %262 = vmatpush1.msra.mxu0 0.0
    %263 = vmatprep.subr.mxu0 0.0
    %264 = vmatpush1.msra.mxu0 0.0
    %265 = vmatprep.subr.mxu0 0.0
    %266 = vmatpush1.msra.mxu0 0.0
    %267 = vmatprep.subr.mxu0 0.0
    %268 = vmatpush1.msra.mxu0 0.0
    %269 = vmatprep.subr.mxu0 0.0
    %270 = vmatpush1.msra.mxu0 0.0
    %271 = vmatprep.subr.mxu0 0.0
    %272 = vmatpush1.msra.mxu0 0.0
    %273 = vmatprep.subr.mxu0 0.0
    %274 = vmatpush1.msra.mxu0 0.0
    %275 = vmatprep.subr.mxu0 0.0
    %276 = vmatpush1.msra.mxu0 0.0
    %277 = vmatprep.subr.mxu0 0.0
    %278 = vmatpush1.msra.mxu0 0.0
    %279 = vmatprep.subr.mxu0 0.0
    %280 = vmatpush1.msra.mxu0 0.0
    %281 = vmatprep.subr.mxu0 0.0
    %282 = vmatpush1.msra.mxu0 0.0
    %283 = vmatprep.subr.mxu0 0.0
    %284 = vmatpush1.msra.mxu0 0.0
    %285 = vmatprep.subr.mxu0 0.0
    %286 = vmatpush1.msra.mxu0 0.0
    %287 = vmatprep.subr.mxu0 0.0
    %288 = vmatpush1.msra.mxu0 0.0
    %289 = vmatprep.subr.mxu0 0.0
    %290 = vmatpush1.msra.mxu0 0.0
    %291 = vmatprep.subr.mxu0 0.0
    %292 = vmatpush1.msra.mxu0 0.0
    %293 = vmatprep.subr.mxu0 0.0
    %294 = vmatpush1.msra.mxu0 0.0
    %295 = vmatprep.mubr.f32.mxu0 0.0
    %296 = vmatmul.mubr.f32.gmra.mrb[0].mxu0 %v226
    %v297 = vpop.f32.mrb[0].mxu0
    %v298 = vadd.f32 %v223, %v297
    %v299 = vpop.f32.mrb[0].mxu0
    %300 = vmatprep.mubr.f32.mxu0 0.0
    %301 = vmatmul.mubr.f32.gmra.mrb[0].mxu0 %v229
    %v302 = vpop.f32.mrb[0].mxu0
    %v303 = vadd.f32 %v223, %v302
    %v304 = vpop.f32.mrb[0].mxu0
    %305 = vdwg.mxu0
    %v306 = vld [vmem:[%s8] sm:$0xff]
    %v307 = vld [vmem:[%s8 + $0x8] sm:$0xff]
    %v308 = vld [vmem:[%s8 + $0x10] sm:$0xff]
    %v309 = vld [vmem:[%s8 + $0x18] sm:$0xff]
    %v310 = vld [vmem:[%s9] sm:$0x1]
    %313 = vrot.lane.b32.xlu0 %v298, 96
    %v314 = vpop.permute.xlu0 %313
    %315 = vrot.lane.b32.xlu0 %v303, 96
    %v316 = vpop.permute.xlu0 %315
    %vm317 = vcmask 130048
    %v318 = vsel %vm317, %v298, 0
    %v320 = vsel %vm317, %v303, 0
    %v322 = vsel %vm317, %v314, 0
    %v324 = vsel %vm317, %v316, 0
    %326 = vmatprep.subr.mxu0 0.0
    %327 = vmatpush1.xpose.msra.mxu0 %v322
    %328 = vmatprep.subr.mxu0 0.0
    %329 = vmatpush1.xpose.msra.mxu0 %v324
    %330 = vmatprep.subr.mxu0 0.0
    %331 = vmatpush1.xpose.msra.mxu0 0.0
    %332 = vmatprep.subr.mxu0 0.0
    %333 = vmatpush1.xpose.msra.mxu0 0.0
    %334 = vmatprep.subr.mxu0 0.0
    %335 = vmatpush1.xpose.msra.mxu0 0.0
    %336 = vmatprep.subr.mxu0 0.0
    %337 = vmatpush1.xpose.msra.mxu0 0.0
    %338 = vmatprep.subr.mxu0 0.0
    %339 = vmatpush1.xpose.msra.mxu0 0.0
    %340 = vmatprep.subr.mxu0 0.0
    %341 = vmatpush1.xpose.msra.mxu0 0.0
    %342 = vmatprep.subr.mxu0 0.0
    %343 = vmatpush1.xpose.msra.mxu0 0.0
    %344 = vmatprep.subr.mxu0 0.0
    %345 = vmatpush1.xpose.msra.mxu0 0.0
    %346 = vmatprep.subr.mxu0 0.0
    %347 = vmatpush1.xpose.msra.mxu0 0.0
    %348 = vmatprep.subr.mxu0 0.0
    %349 = vmatpush1.xpose.msra.mxu0 0.0
    %350 = vmatprep.subr.mxu0 0.0
    %351 = vmatpush1.xpose.msra.mxu0 0.0
    %352 = vmatprep.subr.mxu0 0.0
    %353 = vmatpush1.xpose.msra.mxu0 0.0
    %354 = vmatprep.subr.mxu0 0.0
    %355 = vmatpush1.xpose.msra.mxu0 0.0
    %356 = vmatprep.subr.mxu0 0.0
    %357 = vmatpush1.xpose.msra.mxu0 0.0
    %358 = vmatprep.subr.mxu0 0.0
    %359 = vmatpush1.xpose.msra.mxu0 0.0
    %360 = vmatprep.subr.mxu0 0.0
    %361 = vmatpush1.xpose.msra.mxu0 0.0
    %362 = vmatprep.subr.mxu0 0.0
    %363 = vmatpush1.xpose.msra.mxu0 0.0
    %364 = vmatprep.subr.mxu0 0.0
    %365 = vmatpush1.xpose.msra.mxu0 0.0
    %366 = vmatprep.subr.mxu0 0.0
    %367 = vmatpush1.xpose.msra.mxu0 0.0
    %368 = vmatprep.subr.mxu0 0.0
    %369 = vmatpush1.xpose.msra.mxu0 0.0
    %370 = vmatprep.subr.mxu0 0.0
    %371 = vmatpush1.xpose.msra.mxu0 0.0
    %372 = vmatprep.subr.mxu0 0.0
    %373 = vmatpush1.xpose.msra.mxu0 0.0
    %374 = vmatprep.subr.mxu0 0.0
    %375 = vmatpush1.xpose.msra.mxu0 0.0
    %376 = vmatprep.subr.mxu0 0.0
    %377 = vmatpush1.xpose.msra.mxu0 0.0
    %378 = vmatprep.subr.mxu0 0.0
    %379 = vmatpush1.xpose.msra.mxu0 0.0
    %380 = vmatprep.subr.mxu0 0.0
    %381 = vmatpush1.xpose.msra.mxu0 0.0
    %382 = vmatprep.subr.mxu0 0.0
    %383 = vmatpush1.xpose.msra.mxu0 0.0
    %384 = vmatprep.subr.mxu0 0.0
    %385 = vmatpush1.xpose.msra.mxu0 0.0
    %386 = vmatprep.subr.mxu0 0.0
    %387 = vmatpush1.xpose.msra.mxu0 0.0
    %388 = vmatprep.subr.mxu0 0.0
    %389 = vmatpush1.xpose.msra.mxu0 0.0
    %390 = vmatprep.mubr.f32.mxu0 0.0
    %391 = vmatmul.mubr.f32.gmra.mrb[0].mxu0 %v318
    %v392 = vpop.f32.mrb[0].mxu0
    %v393 = vadd.f32 %v164, %v392
    %v394 = vpop.f32.mrb[0].mxu0
    %395 = vmatprep.mubr.f32.mxu0 0.0
    %396 = vmatmul.mubr.f32.gmra.mrb[0].mxu0 %v320
    %v397 = vpop.f32.mrb[0].mxu0
    %v398 = vadd.f32 %v165, %v397
    %v399 = vpop.f32.mrb[0].mxu0
    %400 = vdwg.mxu0
    %vm401 = vcmask 80896
    %v402 = vsel %vm401, %v393, -inf
    %403 = vmax.xlane.f32.xlu0 %v402
    %v404 = vpop.xlane.xlu0 %403
    %vm405 = vcmask 74752
    %v406 = vsel %vm405, %v398, -inf
    %407 = vmax.xlane.f32.xlu0 %v406
    %v408 = vpop.xlane.xlu0 %407
    %v409 = vsub.f32 %v393, %v404
    %v410 = vsub.f32 %v398, %v408
    %v411 = vmul.f32 %v409, 1.442695
    %v412 = vpow.pop %v411
    %v413 = vmul.f32 %v410, 1.442695
    %v414 = vpow.pop %v413
    %v415 = vsel %vm401, %v412, 0.0
    %416 = vadd.xlane.f32.xlu0 %v415
    %v417 = vpop.xlane.xlu0 %416
    %v418 = vsel %vm405, %v414, 0.0
    %419 = vadd.xlane.f32.xlu0 %v418
    %v420 = vpop.xlane.xlu0 %419
    %v421 = vrcp.pop %v417
    %v422 = vrcp.pop %v420
    %v423 = vmul.f32 %v412, %v421
    %v424 = vmul.f32 %v414, %v422
    %425 = vrot.lane.b32.xlu0 %v298, 64
    %v426 = vpop.permute.xlu0 %425
    %427 = vrot.lane.b32.xlu0 %v303, 64
    %v428 = vpop.permute.xlu0 %427
    %v431 = vsel %vm401, %v423, 0
    %v434 = vsel %vm401, %v424, 0
    %vm436 = vcmask 1041408
    %v437 = vsel %vm436, %v428, 0
    %439 = vmatprep.subr.mxu0 0.0
    %440 = vmatpush1.msra.mxu0 %v426
    %441 = vmatprep.subr.mxu0 0.0
    %442 = vmatpush1.msra.mxu0 %v437
    %443 = vmatprep.subr.mxu0 0.0
    %444 = vmatpush1.msra.mxu0 0.0
    %445 = vmatprep.subr.mxu0 0.0
    %446 = vmatpush1.msra.mxu0 0.0
    %447 = vmatprep.subr.mxu0 0.0
    %448 = vmatpush1.msra.mxu0 0.0
    %449 = vmatprep.subr.mxu0 0.0
    %450 = vmatpush1.msra.mxu0 0.0
    %451 = vmatprep.subr.mxu0 0.0
    %452 = vmatpush1.msra.mxu0 0.0
    %453 = vmatprep.subr.mxu0 0.0
    %454 = vmatpush1.msra.mxu0 0.0
    %455 = vmatprep.subr.mxu0 0.0
    %456 = vmatpush1.msra.mxu0 0.0
    %457 = vmatprep.subr.mxu0 0.0
    %458 = vmatpush1.msra.mxu0 0.0
    %459 = vmatprep.subr.mxu0 0.0
    %460 = vmatpush1.msra.mxu0 0.0
    %461 = vmatprep.subr.mxu0 0.0
    %462 = vmatpush1.msra.mxu0 0.0
    %463 = vmatprep.subr.mxu0 0.0
    %464 = vmatpush1.msra.mxu0 0.0
    %465 = vmatprep.subr.mxu0 0.0
    %466 = vmatpush1.msra.mxu0 0.0
    %467 = vmatprep.subr.mxu0 0.0
    %468 = vmatpush1.msra.mxu0 0.0
    %469 = vmatprep.subr.mxu0 0.0
    %470 = vmatpush1.msra.mxu0 0.0
    %471 = vmatprep.subr.mxu0 0.0
    %472 = vmatpush1.msra.mxu0 0.0
    %473 = vmatprep.subr.mxu0 0.0
    %474 = vmatpush1.msra.mxu0 0.0
    %475 = vmatprep.subr.mxu0 0.0
    %476 = vmatpush1.msra.mxu0 0.0
    %477 = vmatprep.subr.mxu0 0.0
    %478 = vmatpush1.msra.mxu0 0.0
    %479 = vmatprep.subr.mxu0 0.0
    %480 = vmatpush1.msra.mxu0 0.0
    %481 = vmatprep.subr.mxu0 0.0
    %482 = vmatpush1.msra.mxu0 0.0
    %483 = vmatprep.subr.mxu0 0.0
    %484 = vmatpush1.msra.mxu0 0.0
    %485 = vmatprep.subr.mxu0 0.0
    %486 = vmatpush1.msra.mxu0 0.0
    %487 = vmatprep.subr.mxu0 0.0
    %488 = vmatpush1.msra.mxu0 0.0
    %489 = vmatprep.subr.mxu0 0.0
    %490 = vmatpush1.msra.mxu0 0.0
    %491 = vmatprep.subr.mxu0 0.0
    %492 = vmatpush1.msra.mxu0 0.0
    %493 = vmatprep.subr.mxu0 0.0
    %494 = vmatpush1.msra.mxu0 0.0
    %495 = vmatprep.subr.mxu0 0.0
    %496 = vmatpush1.msra.mxu0 0.0
    %497 = vmatprep.subr.mxu0 0.0
    %498 = vmatpush1.msra.mxu0 0.0
    %499 = vmatprep.subr.mxu0 0.0
    %500 = vmatpush1.msra.mxu0 0.0
    %501 = vmatprep.subr.mxu0 0.0
    %502 = vmatpush1.msra.mxu0 0.0
    %503 = vmatprep.mubr.f32.mxu0 0.0
    %504 = vmatmul.mubr.f32.gmra.mrb[0].mxu0 %v431
    %v505 = vpop.f32.mrb[0].mxu0
    %v506 = vadd.f32 0.0, %v505
    %v507 = vpop.f32.mrb[0].mxu0
    %508 = vmatprep.mubr.f32.mxu0 0.0
    %509 = vmatmul.mubr.f32.gmra.mrb[0].mxu0 %v434
    %v510 = vpop.f32.mrb[0].mxu0
    %v511 = vadd.f32 0.0, %v510
    %v512 = vpop.f32.mrb[0].mxu0
    %513 = vdwg.mxu0
    %v515 = vsel %vm317, %v506, 0
    %v518 = vsel %vm317, %v511, 0
    %520 = vmatprep.subr.mxu0 0.0
    %521 = vmatpush1.msra.mxu0 %v306
    %522 = vmatprep.subr.mxu0 0.0
    %523 = vmatpush1.msra.mxu0 %v307
    %524 = vmatprep.subr.mxu0 0.0
    %525 = vmatpush1.msra.mxu0 0.0
    %526 = vmatprep.subr.mxu0 0.0
    %527 = vmatpush1.msra.mxu0 0.0
    %528 = vmatprep.subr.mxu0 0.0
    %529 = vmatpush1.msra.mxu0 0.0
    %530 = vmatprep.subr.mxu0 0.0
    %531 = vmatpush1.msra.mxu0 0.0
    %532 = vmatprep.subr.mxu0 0.0
    %533 = vmatpush1.msra.mxu0 0.0
    %534 = vmatprep.subr.mxu0 0.0
    %535 = vmatpush1.msra.mxu0 0.0
    %536 = vmatprep.subr.mxu0 0.0
    %537 = vmatpush1.msra.mxu0 0.0
    %538 = vmatprep.subr.mxu0 0.0
    %539 = vmatpush1.msra.mxu0 0.0
    %540 = vmatprep.subr.mxu0 0.0
    %541 = vmatpush1.msra.mxu0 0.0
    %542 = vmatprep.subr.mxu0 0.0
    %543 = vmatpush1.msra.mxu0 0.0
    %544 = vmatprep.subr.mxu0 0.0
    %545 = vmatpush1.msra.mxu0 0.0
    %546 = vmatprep.subr.mxu0 0.0
    %547 = vmatpush1.msra.mxu0 0.0
    %548 = vmatprep.subr.mxu0 0.0
    %549 = vmatpush1.msra.mxu0 0.0
    %550 = vmatprep.subr.mxu0 0.0
    %551 = vmatpush1.msra.mxu0 0.0
    %552 = vmatprep.subr.mxu0 0.0
    %553 = vmatpush1.msra.mxu0 0.0
    %554 = vmatprep.subr.mxu0 0.0
    %555 = vmatpush1.msra.mxu0 0.0
    %556 = vmatprep.subr.mxu0 0.0
    %557 = vmatpush1.msra.mxu0 0.0
    %558 = vmatprep.subr.mxu0 0.0
    %559 = vmatpush1.msra.mxu0 0.0
    %560 = vmatprep.subr.mxu0 0.0
    %561 = vmatpush1.msra.mxu0 0.0
    %562 = vmatprep.subr.mxu0 0.0
    %563 = vmatpush1.msra.mxu0 0.0
    %564 = vmatprep.subr.mxu0 0.0
    %565 = vmatpush1.msra.mxu0 0.0
    %566 = vmatprep.subr.mxu0 0.0
    %567 = vmatpush1.msra.mxu0 0.0
    %568 = vmatprep.subr.mxu0 0.0
    %569 = vmatpush1.msra.mxu0 0.0
    %570 = vmatprep.subr.mxu0 0.0
    %571 = vmatpush1.msra.mxu0 0.0
    %572 = vmatprep.subr.mxu0 0.0
    %573 = vmatpush1.msra.mxu0 0.0
    %574 = vmatprep.subr.mxu0 0.0
    %575 = vmatpush1.msra.mxu0 0.0
    %576 = vmatprep.subr.mxu0 0.0
    %577 = vmatpush1.msra.mxu0 0.0
    %578 = vmatprep.subr.mxu0 0.0
    %579 = vmatpush1.msra.mxu0 0.0
    %580 = vmatprep.subr.mxu0 0.0
    %581 = vmatpush1.msra.mxu0 0.0
    %582 = vmatprep.subr.mxu0 0.0
    %583 = vmatpush1.msra.mxu0 0.0
    %584 = vmatprep.mubr.f32.mxu0 0.0
    %585 = vmatmul.mubr.f32.gmra.mrb[0].mxu0 %v515
    %v586 = vpop.f32.mrb[0].mxu0
    %v587 = vadd.f32 0.0, %v586
    %v588 = vpop.f32.mrb[0].mxu0
    %589 = vmatprep.mubr.f32.mxu0 0.0
    %590 = vmatmul.mubr.f32.gmra.mrb[0].mxu0 %v518
    %v591 = vpop.f32.mrb[0].mxu0
    %v592 = vadd.f32 0.0, %v591
    %v593 = vpop.f32.mrb[0].mxu0
    %594 = vdwg.mxu0
    %v596 = vlaneseq
    %v597 = vshrl.u32 %v596, 7
    %v598 = vsub.s32 0, %v597
    %v599 = vrot.slane %v310, %v598
    %v601 = vadd.f32 %v599, %v587
    %v602 = vadd.f32 %v599, %v592
    %603 = vrot.lane.b32.xlu0 %v298, 112
    %v604 = vpop.permute.xlu0 %603
    %605 = vrot.lane.b32.xlu0 %v303, 112
    %v606 = vpop.permute.xlu0 %605
    %607 = vrot.lane.b32.xlu0 %v298, 80
    %v608 = vpop.permute.xlu0 %607
    %609 = vrot.lane.b32.xlu0 %v303, 80
    %v610 = vpop.permute.xlu0 %609
    %v611 = vsel %vm317, %v604, 0
    %v613 = vsel %vm317, %v606, 0
    %v615 = vsel %vm317, %v608, 0
    %v617 = vsel %vm317, %v610, 0
    %619 = vmatprep.subr.mxu0 0.0
    %620 = vmatpush1.xpose.msra.mxu0 %v615
    %621 = vmatprep.subr.mxu0 0.0
    %622 = vmatpush1.xpose.msra.mxu0 %v617
    %623 = vmatprep.subr.mxu0 0.0
    %624 = vmatpush1.xpose.msra.mxu0 0.0
    %625 = vmatprep.subr.mxu0 0.0
    %626 = vmatpush1.xpose.msra.mxu0 0.0
    %627 = vmatprep.subr.mxu0 0.0
    %628 = vmatpush1.xpose.msra.mxu0 0.0
    %629 = vmatprep.subr.mxu0 0.0
    %630 = vmatpush1.xpose.msra.mxu0 0.0
    %631 = vmatprep.subr.mxu0 0.0
    %632 = vmatpush1.xpose.msra.mxu0 0.0
    %633 = vmatprep.subr.mxu0 0.0
    %634 = vmatpush1.xpose.msra.mxu0 0.0
    %635 = vmatprep.subr.mxu0 0.0
    %636 = vmatpush1.xpose.msra.mxu0 0.0
    %637 = vmatprep.subr.mxu0 0.0
    %638 = vmatpush1.xpose.msra.mxu0 0.0
    %639 = vmatprep.subr.mxu0 0.0
    %640 = vmatpush1.xpose.msra.mxu0 0.0
    %641 = vmatprep.subr.mxu0 0.0
    %642 = vmatpush1.xpose.msra.mxu0 0.0
    %643 = vmatprep.subr.mxu0 0.0
    %644 = vmatpush1.xpose.msra.mxu0 0.0
    %645 = vmatprep.subr.mxu0 0.0
    %646 = vmatpush1.xpose.msra.mxu0 0.0
    %647 = vmatprep.subr.mxu0 0.0
    %648 = vmatpush1.xpose.msra.mxu0 0.0
    %649 = vmatprep.subr.mxu0 0.0
    %650 = vmatpush1.xpose.msra.mxu0 0.0
    %651 = vmatprep.subr.mxu0 0.0
    %652 = vmatpush1.xpose.msra.mxu0 0.0
    %653 = vmatprep.subr.mxu0 0.0
    %654 = vmatpush1.xpose.msra.mxu0 0.0
    %655 = vmatprep.subr.mxu0 0.0
    %656 = vmatpush1.xpose.msra.mxu0 0.0
    %657 = vmatprep.subr.mxu0 0.0
    %658 = vmatpush1.xpose.msra.mxu0 0.0
    %659 = vmatprep.subr.mxu0 0.0
    %660 = vmatpush1.xpose.msra.mxu0 0.0
    %661 = vmatprep.subr.mxu0 0.0
    %662 = vmatpush1.xpose.msra.mxu0 0.0
    %663 = vmatprep.subr.mxu0 0.0
    %664 = vmatpush1.xpose.msra.mxu0 0.0
    %665 = vmatprep.subr.mxu0 0.0
    %666 = vmatpush1.xpose.msra.mxu0 0.0
    %667 = vmatprep.subr.mxu0 0.0
    %668 = vmatpush1.xpose.msra.mxu0 0.0
    %669 = vmatprep.subr.mxu0 0.0
    %670 = vmatpush1.xpose.msra.mxu0 0.0
    %671 = vmatprep.subr.mxu0 0.0
    %672 = vmatpush1.xpose.msra.mxu0 0.0
    %673 = vmatprep.subr.mxu0 0.0
    %674 = vmatpush1.xpose.msra.mxu0 0.0
    %675 = vmatprep.subr.mxu0 0.0
    %676 = vmatpush1.xpose.msra.mxu0 0.0
    %677 = vmatprep.subr.mxu0 0.0
    %678 = vmatpush1.xpose.msra.mxu0 0.0
    %679 = vmatprep.subr.mxu0 0.0
    %680 = vmatpush1.xpose.msra.mxu0 0.0
    %681 = vmatprep.subr.mxu0 0.0
    %682 = vmatpush1.xpose.msra.mxu0 0.0
    %683 = vmatprep.mubr.f32.mxu0 0.0
    %684 = vmatmul.mubr.f32.gmra.mrb[0].mxu0 %v611
    %v685 = vpop.f32.mrb[0].mxu0
    %v686 = vadd.f32 %v164, %v685
    %v687 = vpop.f32.mrb[0].mxu0
    %688 = vmatprep.mubr.f32.mxu0 0.0
    %689 = vmatmul.mubr.f32.gmra.mrb[0].mxu0 %v613
    %v690 = vpop.f32.mrb[0].mxu0
    %v691 = vadd.f32 %v165, %v690
    %v692 = vpop.f32.mrb[0].mxu0
    %693 = vdwg.mxu0
    %v694 = vsel %vm401, %v686, -inf
    %695 = vmax.xlane.f32.xlu0 %v694
    %v696 = vpop.xlane.xlu0 %695
    %v697 = vsel %vm405, %v691, -inf
    %698 = vmax.xlane.f32.xlu0 %v697
    %v699 = vpop.xlane.xlu0 %698
    %v700 = vsub.f32 %v686, %v696
    %v701 = vsub.f32 %v691, %v699
    %v702 = vmul.f32 %v700, 1.442695
    %v703 = vpow.pop %v702
    %v704 = vmul.f32 %v701, 1.442695
    %v705 = vpow.pop %v704
    %v706 = vsel %vm401, %v703, 0.0
    %707 = vadd.xlane.f32.xlu0 %v706
    %v708 = vpop.xlane.xlu0 %707
    %v709 = vsel %vm405, %v705, 0.0
    %710 = vadd.xlane.f32.xlu0 %v709
    %v711 = vpop.xlane.xlu0 %710
    %v712 = vrcp.pop %v708
    %v713 = vrcp.pop %v711
    %v714 = vmul.f32 %v703, %v712
    %v715 = vmul.f32 %v705, %v713
    %716 = vrot.lane.b32.xlu0 %v298, 48
    %v717 = vpop.permute.xlu0 %716
    %718 = vrot.lane.b32.xlu0 %v303, 48
    %v719 = vpop.permute.xlu0 %718
    %v722 = vsel %vm401, %v714, 0
    %v725 = vsel %vm401, %v715, 0
    %v727 = vsel %vm436, %v719, 0
    %729 = vmatprep.subr.mxu0 0.0
    %730 = vmatpush1.msra.mxu0 %v717
    %731 = vmatprep.subr.mxu0 0.0
    %732 = vmatpush1.msra.mxu0 %v727
    %733 = vmatprep.subr.mxu0 0.0
    %734 = vmatpush1.msra.mxu0 0.0
    %735 = vmatprep.subr.mxu0 0.0
    %736 = vmatpush1.msra.mxu0 0.0
    %737 = vmatprep.subr.mxu0 0.0
    %738 = vmatpush1.msra.mxu0 0.0
    %739 = vmatprep.subr.mxu0 0.0
    %740 = vmatpush1.msra.mxu0 0.0
    %741 = vmatprep.subr.mxu0 0.0
    %742 = vmatpush1.msra.mxu0 0.0
    %743 = vmatprep.subr.mxu0 0.0
    %744 = vmatpush1.msra.mxu0 0.0
    %745 = vmatprep.subr.mxu0 0.0
    %746 = vmatpush1.msra.mxu0 0.0
    %747 = vmatprep.subr.mxu0 0.0
    %748 = vmatpush1.msra.mxu0 0.0
    %749 = vmatprep.subr.mxu0 0.0
    %750 = vmatpush1.msra.mxu0 0.0
    %751 = vmatprep.subr.mxu0 0.0
    %752 = vmatpush1.msra.mxu0 0.0
    %753 = vmatprep.subr.mxu0 0.0
    %754 = vmatpush1.msra.mxu0 0.0
    %755 = vmatprep.subr.mxu0 0.0
    %756 = vmatpush1.msra.mxu0 0.0
    %757 = vmatprep.subr.mxu0 0.0
    %758 = vmatpush1.msra.mxu0 0.0
    %759 = vmatprep.subr.mxu0 0.0
    %760 = vmatpush1.msra.mxu0 0.0
    %761 = vmatprep.subr.mxu0 0.0
    %762 = vmatpush1.msra.mxu0 0.0
    %763 = vmatprep.subr.mxu0 0.0
    %764 = vmatpush1.msra.mxu0 0.0
    %765 = vmatprep.subr.mxu0 0.0
    %766 = vmatpush1.msra.mxu0 0.0
    %767 = vmatprep.subr.mxu0 0.0
    %768 = vmatpush1.msra.mxu0 0.0
    %769 = vmatprep.subr.mxu0 0.0
    %770 = vmatpush1.msra.mxu0 0.0
    %771 = vmatprep.subr.mxu0 0.0
    %772 = vmatpush1.msra.mxu0 0.0
    %773 = vmatprep.subr.mxu0 0.0
    %774 = vmatpush1.msra.mxu0 0.0
    %775 = vmatprep.subr.mxu0 0.0
    %776 = vmatpush1.msra.mxu0 0.0
    %777 = vmatprep.subr.mxu0 0.0
    %778 = vmatpush1.msra.mxu0 0.0
    %779 = vmatprep.subr.mxu0 0.0
    %780 = vmatpush1.msra.mxu0 0.0
    %781 = vmatprep.subr.mxu0 0.0
    %782 = vmatpush1.msra.mxu0 0.0
    %783 = vmatprep.subr.mxu0 0.0
    %784 = vmatpush1.msra.mxu0 0.0
    %785 = vmatprep.subr.mxu0 0.0
    %786 = vmatpush1.msra.mxu0 0.0
    %787 = vmatprep.subr.mxu0 0.0
    %788 = vmatpush1.msra.mxu0 0.0
    %789 = vmatprep.subr.mxu0 0.0
    %790 = vmatpush1.msra.mxu0 0.0
    %791 = vmatprep.subr.mxu0 0.0
    %792 = vmatpush1.msra.mxu0 0.0
    %793 = vmatprep.mubr.f32.mxu0 0.0
    %794 = vmatmul.mubr.f32.gmra.mrb[0].mxu0 %v722
    %v795 = vpop.f32.mrb[0].mxu0
    %v796 = vadd.f32 0.0, %v795
    %v797 = vpop.f32.mrb[0].mxu0
    %798 = vmatprep.mubr.f32.mxu0 0.0
    %799 = vmatmul.mubr.f32.gmra.mrb[0].mxu0 %v725
    %v800 = vpop.f32.mrb[0].mxu0
    %v801 = vadd.f32 0.0, %v800
    %v802 = vpop.f32.mrb[0].mxu0
    %803 = vdwg.mxu0
    %v805 = vsel %vm317, %v796, 0
    %v808 = vsel %vm317, %v801, 0
    %810 = vmatprep.subr.mxu0 0.0
    %811 = vmatpush1.msra.mxu0 %v308
    %812 = vmatprep.subr.mxu0 0.0
    %813 = vmatpush1.msra.mxu0 %v309
    %814 = vmatprep.subr.mxu0 0.0
    %815 = vmatpush1.msra.mxu0 0.0
    %816 = vmatprep.subr.mxu0 0.0
    %817 = vmatpush1.msra.mxu0 0.0
    %818 = vmatprep.subr.mxu0 0.0
    %819 = vmatpush1.msra.mxu0 0.0
    %820 = vmatprep.subr.mxu0 0.0
    %821 = vmatpush1.msra.mxu0 0.0
    %822 = vmatprep.subr.mxu0 0.0
    %823 = vmatpush1.msra.mxu0 0.0
    %824 = vmatprep.subr.mxu0 0.0
    %825 = vmatpush1.msra.mxu0 0.0
    %826 = vmatprep.subr.mxu0 0.0
    %827 = vmatpush1.msra.mxu0 0.0
    %828 = vmatprep.subr.mxu0 0.0
    %829 = vmatpush1.msra.mxu0 0.0
    %830 = vmatprep.subr.mxu0 0.0
    %831 = vmatpush1.msra.mxu0 0.0
    %832 = vmatprep.subr.mxu0 0.0
    %833 = vmatpush1.msra.mxu0 0.0
    %834 = vmatprep.subr.mxu0 0.0
    %835 = vmatpush1.msra.mxu0 0.0
    %836 = vmatprep.subr.mxu0 0.0
    %837 = vmatpush1.msra.mxu0 0.0
    %838 = vmatprep.subr.mxu0 0.0
    %839 = vmatpush1.msra.mxu0 0.0
    %840 = vmatprep.subr.mxu0 0.0
    %841 = vmatpush1.msra.mxu0 0.0
    %842 = vmatprep.subr.mxu0 0.0
    %843 = vmatpush1.msra.mxu0 0.0
    %844 = vmatprep.subr.mxu0 0.0
    %845 = vmatpush1.msra.mxu0 0.0
    %846 = vmatprep.subr.mxu0 0.0
    %847 = vmatpush1.msra.mxu0 0.0
    %848 = vmatprep.subr.mxu0 0.0
    %849 = vmatpush1.msra.mxu0 0.0
    %850 = vmatprep.subr.mxu0 0.0
    %851 = vmatpush1.msra.mxu0 0.0
    %852 = vmatprep.subr.mxu0 0.0
    %853 = vmatpush1.msra.mxu0 0.0
    %854 = vmatprep.subr.mxu0 0.0
    %855 = vmatpush1.msra.mxu0 0.0
    %856 = vmatprep.subr.mxu0 0.0
    %857 = vmatpush1.msra.mxu0 0.0
    %858 = vmatprep.subr.mxu0 0.0
    %859 = vmatpush1.msra.mxu0 0.0
    %860 = vmatprep.subr.mxu0 0.0
    %861 = vmatpush1.msra.mxu0 0.0
    %862 = vmatprep.subr.mxu0 0.0
    %863 = vmatpush1.msra.mxu0 0.0
    %864 = vmatprep.subr.mxu0 0.0
    %865 = vmatpush1.msra.mxu0 0.0
    %866 = vmatprep.subr.mxu0 0.0
    %867 = vmatpush1.msra.mxu0 0.0
    %868 = vmatprep.subr.mxu0 0.0
    %869 = vmatpush1.msra.mxu0 0.0
    %870 = vmatprep.subr.mxu0 0.0
    %871 = vmatpush1.msra.mxu0 0.0
    %872 = vmatprep.subr.mxu0 0.0
    %873 = vmatpush1.msra.mxu0 0.0
    %874 = vmatprep.mubr.f32.mxu0 0.0
    %875 = vmatmul.mubr.f32.gmra.mrb[0].mxu0 %v805
    %v876 = vpop.f32.mrb[0].mxu0
    %v877 = vadd.f32 0.0, %v876
    %v878 = vpop.f32.mrb[0].mxu0
    %879 = vmatprep.mubr.f32.mxu0 0.0
    %880 = vmatmul.mubr.f32.gmra.mrb[0].mxu0 %v808
    %v881 = vpop.f32.mrb[0].mxu0
    %v882 = vadd.f32 0.0, %v881
    %v883 = vpop.f32.mrb[0].mxu0
    %884 = vdwg.mxu0
    %v885 = vadd.f32 %v601, %v877
    %v886 = vadd.f32 %v602, %v882
    %v887 = vadd.f32 %v156, %v885
    %v888 = vadd.f32 %v161, %v886
    %s889 = scalar_lea.vmem %s5, 2
    %v890 = vld [vmem:[%s889] sm:$0x1]
    %s891 = scalar_lea.vmem %s5, 3
    %v892 = vld [vmem:[%s891] sm:$0x1]
    %v893 = vsel %vm169, %v887, 0.0
    %894 = vadd.xlane.f32.xlu0 %v893
    %v895 = vpop.xlane.xlu0 %894
    %v896 = vsel %vm173, %v888, 0.0
    %897 = vadd.xlane.f32.xlu0 %v896
    %v898 = vpop.xlane.xlu0 %897
    %v899 = vmul.f32 %v895, %v177
    %v900 = vmul.f32 %v898, %v177
    %v901 = vsub.f32 %v887, %v899
    %v902 = vsub.f32 %v888, %v900
    %v903 = vmul.f32 %v901, %v901
    %v904 = vmul.f32 %v902, %v902
    %v905 = vsel %vm169, %v903, 0.0
    %906 = vadd.xlane.f32.xlu0 %v905
    %v907 = vpop.xlane.xlu0 %906
    %v908 = vsel %vm173, %v904, 0.0
    %909 = vadd.xlane.f32.xlu0 %v908
    %v910 = vpop.xlane.xlu0 %909
    %v911 = vmul.f32 %v907, %v177
    %v912 = vmul.f32 %v910, %v177
    %v913 = vadd.f32 %v911, 1e-12
    %v914 = vadd.f32 %v912, 1e-12
    %v915 = vrsqrt.pop %v913
    %v916 = vrsqrt.pop %v914
    %v917 = vmul.f32 %v901, %v915
    %v918 = vmul.f32 %v902, %v916
    %v920 = vlaneseq
    %v921 = vshrl.u32 %v920, 7
    %v922 = vsub.s32 0, %v921
    %v923 = vrot.slane %v890, %v922
    %v925 = vmul.f32 %v917, %v923
    %v926 = vmul.f32 %v918, %v923
    %v928 = vlaneseq
    %v929 = vshrl.u32 %v928, 7
    %v930 = vsub.s32 0, %v929
    %v931 = vrot.slane %v892, %v930
    %v933 = vadd.f32 %v925, %v931
    %v934 = vadd.f32 %v926, %v931
    %v935 = vld [vmem:[%s10] sm:$0xff]
    %v936 = vld [vmem:[%s10 + $0x8] sm:$0xff]
    %v937 = vld [vmem:[%s10 + $0x10] sm:$0xff]
    %v938 = vld [vmem:[%s10 + $0x18] sm:$0xff]
    %v939 = vld [vmem:[%s11] sm:$0x1]
    %v941 = vlaneseq
    %v942 = vshrl.u32 %v941, 7
    %v943 = vsub.s32 0, %v942
    %v944 = vrot.slane %v939, %v943
    %v947 = vsel %vm169, %v933, 0
    %v950 = vsel %vm169, %v934, 0
    %952 = vmatprep.subr.mxu0 0.0
    %953 = vmatpush1.msra.mxu0 %v935
    %954 = vmatprep.subr.mxu0 0.0
    %955 = vmatpush1.msra.mxu0 %v936
    %956 = vmatprep.subr.mxu0 0.0
    %957 = vmatpush1.msra.mxu0 %v937
    %958 = vmatprep.subr.mxu0 0.0
    %959 = vmatpush1.msra.mxu0 %v938
    %960 = vmatprep.subr.mxu0 0.0
    %961 = vmatpush1.msra.mxu0 0.0
    %962 = vmatprep.subr.mxu0 0.0
    %963 = vmatpush1.msra.mxu0 0.0
    %964 = vmatprep.subr.mxu0 0.0
    %965 = vmatpush1.msra.mxu0 0.0
    %966 = vmatprep.subr.mxu0 0.0
    %967 = vmatpush1.msra.mxu0 0.0
    %968 = vmatprep.subr.mxu0 0.0
    %969 = vmatpush1.msra.mxu0 0.0
    %970 = vmatprep.subr.mxu0 0.0
    %971 = vmatpush1.msra.mxu0 0.0
    %972 = vmatprep.subr.mxu0 0.0
    %973 = vmatpush1.msra.mxu0 0.0
    %974 = vmatprep.subr.mxu0 0.0
    %975 = vmatpush1.msra.mxu0 0.0
    %976 = vmatprep.subr.mxu0 0.0
    %977 = vmatpush1.msra.mxu0 0.0
    %978 = vmatprep.subr.mxu0 0.0
    %979 = vmatpush1.msra.mxu0 0.0
    %980 = vmatprep.subr.mxu0 0.0
    %981 = vmatpush1.msra.mxu0 0.0
    %982 = vmatprep.subr.mxu0 0.0
    %983 = vmatpush1.msra.mxu0 0.0
    %984 = vmatprep.subr.mxu0 0.0
    %985 = vmatpush1.msra.mxu0 0.0
    %986 = vmatprep.subr.mxu0 0.0
    %987 = vmatpush1.msra.mxu0 0.0
    %988 = vmatprep.subr.mxu0 0.0
    %989 = vmatpush1.msra.mxu0 0.0
    %990 = vmatprep.subr.mxu0 0.0
    %991 = vmatpush1.msra.mxu0 0.0
    %992 = vmatprep.subr.mxu0 0.0
    %993 = vmatpush1.msra.mxu0 0.0
    %994 = vmatprep.subr.mxu0 0.0
    %995 = vmatpush1.msra.mxu0 0.0
    %996 = vmatprep.subr.mxu0 0.0
    %997 = vmatpush1.msra.mxu0 0.0
    %998 = vmatprep.subr.mxu0 0.0
    %999 = vmatpush1.msra.mxu0 0.0
    %1000 = vmatprep.subr.mxu0 0.0
    %1001 = vmatpush1.msra.mxu0 0.0
    %1002 = vmatprep.subr.mxu0 0.0
    %1003 = vmatpush1.msra.mxu0 0.0
    %1004 = vmatprep.subr.mxu0 0.0
    %1005 = vmatpush1.msra.mxu0 0.0
    %1006 = vmatprep.subr.mxu0 0.0
    %1007 = vmatpush1.msra.mxu0 0.0
    %1008 = vmatprep.subr.mxu0 0.0
    %1009 = vmatpush1.msra.mxu0 0.0
    %1010 = vmatprep.subr.mxu0 0.0
    %1011 = vmatpush1.msra.mxu0 0.0
    %1012 = vmatprep.subr.mxu0 0.0
    %1013 = vmatpush1.msra.mxu0 0.0
    %1014 = vmatprep.subr.mxu0 0.0
    %1015 = vmatpush1.msra.mxu0 0.0
    %1016 = vmatprep.mubr.f32.mxu0 0.0
    %1017 = vmatmul.mubr.f32.gmra.mrb[0].mxu0 %v947
    %v1018 = vpop.f32.mrb[0].mxu0
    %v1019 = vadd.f32 %v944, %v1018
    %v1020 = vpop.f32.mrb[0].mxu0
    %1021 = vmatprep.mubr.f32.mxu0 0.0
    %1022 = vmatmul.mubr.f32.gmra.mrb[0].mxu0 %v950
    %v1023 = vpop.f32.mrb[0].mxu0
    %v1024 = vadd.f32 %v944, %v1023
    %v1025 = vpop.f32.mrb[0].mxu0
    %1026 = vdwg.mxu0
    %v1027 = vmul.f32 %v1019, 0.5
    %v1028 = vmul.f32 %v1024, 0.5
    %v1029 = vmul.f32 %v1019, 0.044715
    %v1030 = vmul.f32 %v1024, 0.044715
    %v1031 = vmul.f32 %v1029, %v1019
    %v1032 = vmul.f32 %v1030, %v1024
    %v1033 = vmul.f32 %v1031, %v1019
    %v1034 = vmul.f32 %v1032, %v1024
    %v1035 = vadd.f32 %v1019, %v1033
    %v1036 = vadd.f32 %v1024, %v1034
    %v1037 = vmul.f32 %v1035, 0.7978846
    %v1038 = vmul.f32 %v1036, 0.7978846
    %v1039 = vtanh.pop %v1037
    %v1040 = vtanh.pop %v1038
    %v1041 = vadd.f32 %v1039, 1.0
    %v1042 = vadd.f32 %v1040, 1.0
    %v1043 = vmul.f32 %v1027, %v1041
    %v1044 = vmul.f32 %v1028, %v1042
    %v1045 = vld [vmem:[%s12] sm:$0xff]
    %v1046 = vld [vmem:[%s12 + $0x8] sm:$0xff]
    %v1047 = vld [vmem:[%s12 + $0x10] sm:$0xff]
    %v1048 = vld [vmem:[%s12 + $0x18] sm:$0xff]
    %v1049 = vld [vmem:[%s12 + $0x20] sm:$0xff]
    %v1050 = vld [vmem:[%s12 + $0x28] sm:$0xff]
    %v1051 = vld [vmem:[%s12 + $0x30] sm:$0xff]
    %v1052 = vld [vmem:[%s12 + $0x38] sm:$0xff]
    %v1053 = vld [vmem:[%s12 + $0x40] sm:$0xff]
    %v1054 = vld [vmem:[%s12 + $0x48] sm:$0xff]
    %v1055 = vld [vmem:[%s12 + $0x50] sm:$0xff]
    %v1056 = vld [vmem:[%s12 + $0x58] sm:$0xff]
    %v1057 = vld [vmem:[%s12 + $0x60] sm:$0xff]
    %v1058 = vld [vmem:[%s12 + $0x68] sm:$0xff]
    %v1059 = vld [vmem:[%s12 + $0x70] sm:$0xff]
    %v1060 = vld [vmem:[%s12 + $0x78] sm:$0xff]
    %1061 = vmatprep.subr.mxu0 0.0
    %1062 = vmatpush1.msra.mxu0 %v1045
    %1063 = vmatprep.subr.mxu0 0.0
    %1064 = vmatpush1.msra.mxu0 %v1046
    %1065 = vmatprep.subr.mxu0 0.0
    %1066 = vmatpush1.msra.mxu0 %v1047
    %1067 = vmatprep.subr.mxu0 0.0
    %1068 = vmatpush1.msra.mxu0 %v1048
    %1069 = vmatprep.subr.mxu0 0.0
    %1070 = vmatpush1.msra.mxu0 %v1049
    %1071 = vmatprep.subr.mxu0 0.0
    %1072 = vmatpush1.msra.mxu0 %v1050
    %1073 = vmatprep.subr.mxu0 0.0
    %1074 = vmatpush1.msra.mxu0 %v1051
    %1075 = vmatprep.subr.mxu0 0.0
    %1076 = vmatpush1.msra.mxu0 %v1052
    %1077 = vmatprep.subr.mxu0 0.0
    %1078 = vmatpush1.msra.mxu0 %v1053
    %1079 = vmatprep.subr.mxu0 0.0
    %1080 = vmatpush1.msra.mxu0 %v1054
    %1081 = vmatprep.subr.mxu0 0.0
    %1082 = vmatpush1.msra.mxu0 %v1055
    %1083 = vmatprep.subr.mxu0 0.0
    %1084 = vmatpush1.msra.mxu0 %v1056
    %1085 = vmatprep.subr.mxu0 0.0
    %1086 = vmatpush1.msra.mxu0 %v1057
    %1087 = vmatprep.subr.mxu0 0.0
    %1088 = vmatpush1.msra.mxu0 %v1058
    %1089 = vmatprep.subr.mxu0 0.0
    %1090 = vmatpush1.msra.mxu0 %v1059
    %1091 = vmatprep.subr.mxu0 0.0
    %1092 = vmatpush1.msra.mxu0 %v1060
    %1093 = vmatprep.subr.mxu0 0.0
    %1094 = vmatpush1.msra.mxu0 0.0
    %1095 = vmatprep.subr.mxu0 0.0
    %1096 = vmatpush1.msra.mxu0 0.0
    %1097 = vmatprep.subr.mxu0 0.0
    %1098 = vmatpush1.msra.mxu0 0.0
    %1099 = vmatprep.subr.mxu0 0.0
    %1100 = vmatpush1.msra.mxu0 0.0
    %1101 = vmatprep.subr.mxu0 0.0
    %1102 = vmatpush1.msra.mxu0 0.0
    %1103 = vmatprep.subr.mxu0 0.0
    %1104 = vmatpush1.msra.mxu0 0.0
    %1105 = vmatprep.subr.mxu0 0.0
    %1106 = vmatpush1.msra.mxu0 0.0
    %1107 = vmatprep.subr.mxu0 0.0
    %1108 = vmatpush1.msra.mxu0 0.0
    %1109 = vmatprep.subr.mxu0 0.0
    %1110 = vmatpush1.msra.mxu0 0.0
    %1111 = vmatprep.subr.mxu0 0.0
    %1112 = vmatpush1.msra.mxu0 0.0
    %1113 = vmatprep.subr.mxu0 0.0
    %1114 = vmatpush1.msra.mxu0 0.0
    %1115 = vmatprep.subr.mxu0 0.0
    %1116 = vmatpush1.msra.mxu0 0.0
    %1117 = vmatprep.subr.mxu0 0.0
    %1118 = vmatpush1.msra.mxu0 0.0
    %1119 = vmatprep.subr.mxu0 0.0
    %1120 = vmatpush1.msra.mxu0 0.0
    %1121 = vmatprep.subr.mxu0 0.0
    %1122 = vmatpush1.msra.mxu0 0.0
    %1123 = vmatprep.subr.mxu0 0.0
    %1124 = vmatpush1.msra.mxu0 0.0
    %1125 = vmatprep.mubr.f32.mxu0 0.0
    %1126 = vmatmul.mubr.f32.gmra.mrb[0].mxu0 %v1043
    %v1127 = vpop.f32.mrb[0].mxu0
    %v1128 = vadd.f32 0.0, %v1127
    %v1129 = vpop.f32.mrb[0].mxu0
    %1130 = vmatprep.mubr.f32.mxu0 0.0
    %1131 = vmatmul.mubr.f32.gmra.mrb[0].mxu0 %v1044
    %v1132 = vpop.f32.mrb[0].mxu0
    %v1133 = vadd.f32 0.0, %v1132
    %v1134 = vpop.f32.mrb[0].mxu0
    %1135 = vdwg.mxu0
    %v1136 = vadd.f32 %v887, %v1128
    %v1137 = vadd.f32 %v888, %v1133
    %v1138 = vld [vmem:[%s13] sm:$0x1]
    %v1140 = vlaneseq
    %v1141 = vshrl.u32 %v1140, 7
    %v1142 = vsub.s32 0, %v1141
    %v1143 = vrot.slane %v1138, %v1142
    %v1145 = vadd.f32 %v1136, %v1143
    %v1146 = vadd.f32 %v1137, %v1143
    %s1147 = scalar_lea.vmem %s5, 4
    %v1148 = vld [vmem:[%s1147] sm:$0x1]
    %s1149 = scalar_lea.vmem %s5, 5
    %v1150 = vld [vmem:[%s1149] sm:$0x1]
    %v1151 = vsel %vm169, %v1145, 0.0
    %1152 = vadd.xlane.f32.xlu0 %v1151
    %v1153 = vpop.xlane.xlu0 %1152
    %v1154 = vsel %vm173, %v1146, 0.0
    %1155 = vadd.xlane.f32.xlu0 %v1154
    %v1156 = vpop.xlane.xlu0 %1155
    %v1157 = vmul.f32 %v1153, %v177
    %v1158 = vmul.f32 %v1156, %v177
    %v1159 = vsub.f32 %v1145, %v1157
    %v1160 = vsub.f32 %v1146, %v1158
    %v1161 = vmul.f32 %v1159, %v1159
    %v1162 = vmul.f32 %v1160, %v1160
    %v1163 = vsel %vm169, %v1161, 0.0
    %1164 = vadd.xlane.f32.xlu0 %v1163
    %v1165 = vpop.xlane.xlu0 %1164
    %v1166 = vsel %vm173, %v1162, 0.0
    %1167 = vadd.xlane.f32.xlu0 %v1166
    %v1168 = vpop.xlane.xlu0 %1167
    %v1169 = vmul.f32 %v1165, %v177
    %v1170 = vmul.f32 %v1168, %v177
    %v1171 = vadd.f32 %v1169, 1e-12
    %v1172 = vadd.f32 %v1170, 1e-12
    %v1173 = vrsqrt.pop %v1171
    %v1174 = vrsqrt.pop %v1172
    %v1175 = vmul.f32 %v1159, %v1173
    %v1176 = vmul.f32 %v1160, %v1174
    %v1178 = vlaneseq
    %v1179 = vshrl.u32 %v1178, 7
    %v1180 = vsub.s32 0, %v1179
    %v1181 = vrot.slane %v1148, %v1180
    %v1183 = vmul.f32 %v1175, %v1181
    %v1184 = vmul.f32 %v1176, %v1181
    %v1186 = vlaneseq
    %v1187 = vshrl.u32 %v1186, 7
    %v1188 = vsub.s32 0, %v1187
    %v1189 = vrot.slane %v1150, %v1188
    %v1191 = vadd.f32 %v1183, %v1189
    %v1192 = vadd.f32 %v1184, %v1189
    %s1193 = scalar_lea.vmem %s6, 32
    %v1194 = vld [vmem:[%s1193] sm:$0xff]
    %v1195 = vld [vmem:[%s1193 + $0x8] sm:$0xff]
    %v1196 = vld [vmem:[%s1193 + $0x10] sm:$0xff]
    %v1197 = vld [vmem:[%s1193 + $0x18] sm:$0xff]
    %s1198 = scalar_lea.vmem %s7, 1
    %v1199 = vld [vmem:[%s1198] sm:$0x1]
    %v1201 = vlaneseq
    %v1202 = vshrl.u32 %v1201, 7
    %v1203 = vsub.s32 0, %v1202
    %v1204 = vrot.slane %v1199, %v1203
    %v1207 = vsel %vm169, %v1191, 0
    %v1210 = vsel %vm169, %v1192, 0
    %1212 = vmatprep.subr.mxu0 0.0
    %1213 = vmatpush1.msra.mxu0 %v1194
    %1214 = vmatprep.subr.mxu0 0.0
    %1215 = vmatpush1.msra.mxu0 %v1195
    %1216 = vmatprep.subr.mxu0 0.0
    %1217 = vmatpush1.msra.mxu0 %v1196
    %1218 = vmatprep.subr.mxu0 0.0
    %1219 = vmatpush1.msra.mxu0 %v1197
    %1220 = vmatprep.subr.mxu0 0.0
    %1221 = vmatpush1.msra.mxu0 0.0
    %1222 = vmatprep.subr.mxu0 0.0
    %1223 = vmatpush1.msra.mxu0 0.0
    %1224 = vmatprep.subr.mxu0 0.0
    %1225 = vmatpush1.msra.mxu0 0.0
    %1226 = vmatprep.subr.mxu0 0.0
    %1227 = vmatpush1.msra.mxu0 0.0
    %1228 = vmatprep.subr.mxu0 0.0
    %1229 = vmatpush1.msra.mxu0 0.0
    %1230 = vmatprep.subr.mxu0 0.0
    %1231 = vmatpush1.msra.mxu0 0.0
    %1232 = vmatprep.subr.mxu0 0.0
    %1233 = vmatpush1.msra.mxu0 0.0
    %1234 = vmatprep.subr.mxu0 0.0
    %1235 = vmatpush1.msra.mxu0 0.0
    %1236 = vmatprep.subr.mxu0 0.0
    %1237 = vmatpush1.msra.mxu0 0.0
    %1238 = vmatprep.subr.mxu0 0.0
    %1239 = vmatpush1.msra.mxu0 0.0
    %1240 = vmatprep.subr.mxu0 0.0
    %1241 = vmatpush1.msra.mxu0 0.0
    %1242 = vmatprep.subr.mxu0 0.0
    %1243 = vmatpush1.msra.mxu0 0.0
    %1244 = vmatprep.subr.mxu0 0.0
    %1245 = vmatpush1.msra.mxu0 0.0
    %1246 = vmatprep.subr.mxu0 0.0
    %1247 = vmatpush1.msra.mxu0 0.0
    %1248 = vmatprep.subr.mxu0 0.0
    %1249 = vmatpush1.msra.mxu0 0.0
    %1250 = vmatprep.subr.mxu0 0.0
    %1251 = vmatpush1.msra.mxu0 0.0
    %1252 = vmatprep.subr.mxu0 0.0
    %1253 = vmatpush1.msra.mxu0 0.0
    %1254 = vmatprep.subr.mxu0 0.0
    %1255 = vmatpush1.msra.mxu0 0.0
    %1256 = vmatprep.subr.mxu0 0.0
    %1257 = vmatpush1.msra.mxu0 0.0
    %1258 = vmatprep.subr.mxu0 0.0
    %1259 = vmatpush1.msra.mxu0 0.0
    %1260 = vmatprep.subr.mxu0 0.0
    %1261 = vmatpush1.msra.mxu0 0.0
    %1262 = vmatprep.subr.mxu0 0.0
    %1263 = vmatpush1.msra.mxu0 0.0
    %1264 = vmatprep.subr.mxu0 0.0
    %1265 = vmatpush1.msra.mxu0 0.0
    %1266 = vmatprep.subr.mxu0 0.0
    %1267 = vmatpush1.msra.mxu0 0.0
    %1268 = vmatprep.subr.mxu0 0.0
    %1269 = vmatpush1.msra.mxu0 0.0
    %1270 = vmatprep.subr.mxu0 0.0
    %1271 = vmatpush1.msra.mxu0 0.0
    %1272 = vmatprep.subr.mxu0 0.0
    %1273 = vmatpush1.msra.mxu0 0.0
    %1274 = vmatprep.subr.mxu0 0.0
    %1275 = vmatpush1.msra.mxu0 0.0
    %1276 = vmatprep.mubr.f32.mxu0 0.0
    %1277 = vmatmul.mubr.f32.gmra.mrb[0].mxu0 %v1207
    %v1278 = vpop.f32.mrb[0].mxu0
    %v1279 = vadd.f32 %v1204, %v1278
    %v1280 = vpop.f32.mrb[0].mxu0
    %1281 = vmatprep.mubr.f32.mxu0 0.0
    %1282 = vmatmul.mubr.f32.gmra.mrb[0].mxu0 %v1210
    %v1283 = vpop.f32.mrb[0].mxu0
    %v1284 = vadd.f32 %v1204, %v1283
    %v1285 = vpop.f32.mrb[0].mxu0
    %1286 = vdwg.mxu0
    %s1287 = scalar_lea.vmem %s8, 32
    %v1288 = vld [vmem:[%s1287] sm:$0xff]
    %v1289 = vld [vmem:[%s1287 + $0x8] sm:$0xff]
    %v1290 = vld [vmem:[%s1287 + $0x10] sm:$0xff]
    %v1291 = vld [vmem:[%s1287 + $0x18] sm:$0xff]
    %s1292 = scalar_lea.vmem %s9, 1
    %v1293 = vld [vmem:[%s1292] sm:$0x1]
    %1296 = vrot.lane.b32.xlu0 %v1279, 96
    %v1297 = vpop.permute.xlu0 %1296
    %1298 = vrot.lane.b32.xlu0 %v1284, 96
    %v1299 = vpop.permute.xlu0 %1298
    %v1300 = vsel %vm317, %v1279, 0
    %v1302 = vsel %vm317, %v1284, 0
    %v1304 = vsel %vm317, %v1297, 0
    %v1306 = vsel %vm317, %v1299, 0
    %1308 = vmatprep.subr.mxu0 0.0
    %1309 = vmatpush1.xpose.msra.mxu0 %v1304
    %1310 = vmatprep.subr.mxu0 0.0
    %1311 = vmatpush1.xpose.msra.mxu0 %v1306
    %1312 = vmatprep.subr.mxu0 0.0
    %1313 = vmatpush1.xpose.msra.mxu0 0.0
    %1314 = vmatprep.subr.mxu0 0.0
    %1315 = vmatpush1.xpose.msra.mxu0 0.0
    %1316 = vmatprep.subr.mxu0 0.0
    %1317 = vmatpush1.xpose.msra.mxu0 0.0
    %1318 = vmatprep.subr.mxu0 0.0
    %1319 = vmatpush1.xpose.msra.mxu0 0.0
    %1320 = vmatprep.subr.mxu0 0.0
    %1321 = vmatpush1.xpose.msra.mxu0 0.0
    %1322 = vmatprep.subr.mxu0 0.0
    %1323 = vmatpush1.xpose.msra.mxu0 0.0
    %1324 = vmatprep.subr.mxu0 0.0
    %1325 = vmatpush1.xpose.msra.mxu0 0.0
    %1326 = vmatprep.subr.mxu0 0.0
    %1327 = vmatpush1.xpose.msra.mxu0 0.0
    %1328 = vmatprep.subr.mxu0 0.0
    %1329 = vmatpush1.xpose.msra.mxu0 0.0
    %1330 = vmatprep.subr.mxu0 0.0
    %1331 = vmatpush1.xpose.msra.mxu0 0.0
    %1332 = vmatprep.subr.mxu0 0.0
    %1333 = vmatpush1.xpose.msra.mxu0 0.0
    %1334 = vmatprep.subr.mxu0 0.0
    %1335 = vmatpush1.xpose.msra.mxu0 0.0
    %1336 = vmatprep.subr.mxu0 0.0
    %1337 = vmatpush1.xpose.msra.mxu0 0.0
    %1338 = vmatprep.subr.mxu0 0.0
    %1339 = vmatpush1.xpose.msra.mxu0 0.0
    %1340 = vmatprep.subr.mxu0 0.0
    %1341 = vmatpush1.xpose.msra.mxu0 0.0
    %1342 = vmatprep.subr.mxu0 0.0
    %1343 = vmatpush1.xpose.msra.mxu0 0.0
    %1344 = vmatprep.subr.mxu0 0.0
    %1345 = vmatpush1.xpose.msra.mxu0 0.0
    %1346 = vmatprep.subr.mxu0 0.0
    %1347 = vmatpush1.xpose.msra.mxu0 0.0
    %1348 = vmatprep.subr.mxu0 0.0
    %1349 = vmatpush1.xpose.msra.mxu0 0.0
    %1350 = vmatprep.subr.mxu0 0.0
    %1351 = vmatpush1.xpose.msra.mxu0 0.0
    %1352 = vmatprep.subr.mxu0 0.0
    %1353 = vmatpush1.xpose.msra.mxu0 0.0
    %1354 = vmatprep.subr.mxu0 0.0
    %1355 = vmatpush1.xpose.msra.mxu0 0.0
    %1356 = vmatprep.subr.mxu0 0.0
    %1357 = vmatpush1.xpose.msra.mxu0 0.0
    %1358 = vmatprep.subr.mxu0 0.0
    %1359 = vmatpush1.xpose.msra.mxu0 0.0
    %1360 = vmatprep.subr.mxu0 0.0
    %1361 = vmatpush1.xpose.msra.mxu0 0.0
    %1362 = vmatprep.subr.mxu0 0.0
    %1363 = vmatpush1.xpose.msra.mxu0 0.0
    %1364 = vmatprep.subr.mxu0 0.0
    %1365 = vmatpush1.xpose.msra.mxu0 0.0
    %1366 = vmatprep.subr.mxu0 0.0
    %1367 = vmatpush1.xpose.msra.mxu0 0.0
    %1368 = vmatprep.subr.mxu0 0.0
    %1369 = vmatpush1.xpose.msra.mxu0 0.0
    %1370 = vmatprep.subr.mxu0 0.0
    %1371 = vmatpush1.xpose.msra.mxu0 0.0
    %1372 = vmatprep.mubr.f32.mxu0 0.0
    %1373 = vmatmul.mubr.f32.gmra.mrb[0].mxu0 %v1300
    %v1374 = vpop.f32.mrb[0].mxu0
    %v1375 = vadd.f32 %v164, %v1374
    %v1376 = vpop.f32.mrb[0].mxu0
    %1377 = vmatprep.mubr.f32.mxu0 0.0
    %1378 = vmatmul.mubr.f32.gmra.mrb[0].mxu0 %v1302
    %v1379 = vpop.f32.mrb[0].mxu0
    %v1380 = vadd.f32 %v165, %v1379
    %v1381 = vpop.f32.mrb[0].mxu0
    %1382 = vdwg.mxu0
    %v1383 = vsel %vm401, %v1375, -inf
    %1384 = vmax.xlane.f32.xlu0 %v1383
    %v1385 = vpop.xlane.xlu0 %1384
    %v1386 = vsel %vm405, %v1380, -inf
    %1387 = vmax.xlane.f32.xlu0 %v1386
    %v1388 = vpop.xlane.xlu0 %1387
    %v1389 = vsub.f32 %v1375, %v1385
    %v1390 = vsub.f32 %v1380, %v1388
    %v1391 = vmul.f32 %v1389, 1.442695
    %v1392 = vpow.pop %v1391
    %v1393 = vmul.f32 %v1390, 1.442695
    %v1394 = vpow.pop %v1393
    %v1395 = vsel %vm401, %v1392, 0.0
    %1396 = vadd.xlane.f32.xlu0 %v1395
    %v1397 = vpop.xlane.xlu0 %1396
    %v1398 = vsel %vm405, %v1394, 0.0
    %1399 = vadd.xlane.f32.xlu0 %v1398
    %v1400 = vpop.xlane.xlu0 %1399
    %v1401 = vrcp.pop %v1397
    %v1402 = vrcp.pop %v1400
    %v1403 = vmul.f32 %v1392, %v1401
    %v1404 = vmul.f32 %v1394, %v1402
    %1405 = vrot.lane.b32.xlu0 %v1279, 64
    %v1406 = vpop.permute.xlu0 %1405
    %1407 = vrot.lane.b32.xlu0 %v1284, 64
    %v1408 = vpop.permute.xlu0 %1407
    %v1411 = vsel %vm401, %v1403, 0
    %v1414 = vsel %vm401, %v1404, 0
    %v1416 = vsel %vm436, %v1408, 0
    %1418 = vmatprep.subr.mxu0 0.0
    %1419 = vmatpush1.msra.mxu0 %v1406
    %1420 = vmatprep.subr.mxu0 0.0
    %1421 = vmatpush1.msra.mxu0 %v1416
    %1422 = vmatprep.subr.mxu0 0.0
    %1423 = vmatpush1.msra.mxu0 0.0
    %1424 = vmatprep.subr.mxu0 0.0
    %1425 = vmatpush1.msra.mxu0 0.0
    %1426 = vmatprep.subr.mxu0 0.0
    %1427 = vmatpush1.msra.mxu0 0.0
    %1428 = vmatprep.subr.mxu0 0.0
    %1429 = vmatpush1.msra.mxu0 0.0
    %1430 = vmatprep.subr.mxu0 0.0
    %1431 = vmatpush1.msra.mxu0 0.0
    %1432 = vmatprep.subr.mxu0 0.0
    %1433 = vmatpush1.msra.mxu0 0.0
    %1434 = vmatprep.subr.mxu0 0.0
    %1435 = vmatpush1.msra.mxu0 0.0
    %1436 = vmatprep.subr.mxu0 0.0
    %1437 = vmatpush1.msra.mxu0 0.0
    %1438 = vmatprep.subr.mxu0 0.0
    %1439 = vmatpush1.msra.mxu0 0.0
    %1440 = vmatprep.subr.mxu0 0.0
    %1441 = vmatpush1.msra.mxu0 0.0
    %1442 = vmatprep.subr.mxu0 0.0
    %1443 = vmatpush1.msra.mxu0 0.0
    %1444 = vmatprep.subr.mxu0 0.0
    %1445 = vmatpush1.msra.mxu0 0.0
    %1446 = vmatprep.subr.mxu0 0.0
    %1447 = vmatpush1.msra.mxu0 0.0
    %1448 = vmatprep.subr.mxu0 0.0
    %1449 = vmatpush1.msra.mxu0 0.0
    %1450 = vmatprep.subr.mxu0 0.0
    %1451 = vmatpush1.msra.mxu0 0.0
    %1452 = vmatprep.subr.mxu0 0.0
    %1453 = vmatpush1.msra.mxu0 0.0
    %1454 = vmatprep.subr.mxu0 0.0
    %1455 = vmatpush1.msra.mxu0 0.0
    %1456 = vmatprep.subr.mxu0 0.0
    %1457 = vmatpush1.msra.mxu0 0.0
    %1458 = vmatprep.subr.mxu0 0.0
    %1459 = vmatpush1.msra.mxu0 0.0
    %1460 = vmatprep.subr.mxu0 0.0
    %1461 = vmatpush1.msra.mxu0 0.0
    %1462 = vmatprep.subr.mxu0 0.0
    %1463 = vmatpush1.msra.mxu0 0.0
    %1464 = vmatprep.subr.mxu0 0.0
    %1465 = vmatpush1.msra.mxu0 0.0
    %1466 = vmatprep.subr.mxu0 0.0
    %1467 = vmatpush1.msra.mxu0 0.0
    %1468 = vmatprep.subr.mxu0 0.0
    %1469 = vmatpush1.msra.mxu0 0.0
    %1470 = vmatprep.subr.mxu0 0.0
    %1471 = vmatpush1.msra.mxu0 0.0
    %1472 = vmatprep.subr.mxu0 0.0
    %1473 = vmatpush1.msra.mxu0 0.0
    %1474 = vmatprep.subr.mxu0 0.0
    %1475 = vmatpush1.msra.mxu0 0.0
    %1476 = vmatprep.subr.mxu0 0.0
    %1477 = vmatpush1.msra.mxu0 0.0
    %1478 = vmatprep.subr.mxu0 0.0
    %1479 = vmatpush1.msra.mxu0 0.0
    %1480 = vmatprep.subr.mxu0 0.0
    %1481 = vmatpush1.msra.mxu0 0.0
    %1482 = vmatprep.mubr.f32.mxu0 0.0
    %1483 = vmatmul.mubr.f32.gmra.mrb[0].mxu0 %v1411
    %v1484 = vpop.f32.mrb[0].mxu0
    %v1485 = vadd.f32 0.0, %v1484
    %v1486 = vpop.f32.mrb[0].mxu0
    %1487 = vmatprep.mubr.f32.mxu0 0.0
    %1488 = vmatmul.mubr.f32.gmra.mrb[0].mxu0 %v1414
    %v1489 = vpop.f32.mrb[0].mxu0
    %v1490 = vadd.f32 0.0, %v1489
    %v1491 = vpop.f32.mrb[0].mxu0
    %1492 = vdwg.mxu0
    %v1494 = vsel %vm317, %v1485, 0
    %v1497 = vsel %vm317, %v1490, 0
    %1499 = vmatprep.subr.mxu0 0.0
    %1500 = vmatpush1.msra.mxu0 %v1288
    %1501 = vmatprep.subr.mxu0 0.0
    %1502 = vmatpush1.msra.mxu0 %v1289
    %1503 = vmatprep.subr.mxu0 0.0
    %1504 = vmatpush1.msra.mxu0 0.0
    %1505 = vmatprep.subr.mxu0 0.0
    %1506 = vmatpush1.msra.mxu0 0.0
    %1507 = vmatprep.subr.mxu0 0.0
    %1508 = vmatpush1.msra.mxu0 0.0
    %1509 = vmatprep.subr.mxu0 0.0
    %1510 = vmatpush1.msra.mxu0 0.0
    %1511 = vmatprep.subr.mxu0 0.0
    %1512 = vmatpush1.msra.mxu0 0.0
    %1513 = vmatprep.subr.mxu0 0.0
    %1514 = vmatpush1.msra.mxu0 0.0
    %1515 = vmatprep.subr.mxu0 0.0
    %1516 = vmatpush1.msra.mxu0 0.0
    %1517 = vmatprep.subr.mxu0 0.0
    %1518 = vmatpush1.msra.mxu0 0.0
    %1519 = vmatprep.subr.mxu0 0.0
    %1520 = vmatpush1.msra.mxu0 0.0
    %1521 = vmatprep.subr.mxu0 0.0
    %1522 = vmatpush1.msra.mxu0 0.0
    %1523 = vmatprep.subr.mxu0 0.0
    %1524 = vmatpush1.msra.mxu0 0.0
    %1525 = vmatprep.subr.mxu0 0.0
    %1526 = vmatpush1.msra.mxu0 0.0
    %1527 = vmatprep.subr.mxu0 0.0
    %1528 = vmatpush1.msra.mxu0 0.0
    %1529 = vmatprep.subr.mxu0 0.0
    %1530 = vmatpush1.msra.mxu0 0.0
    %1531 = vmatprep.subr.mxu0 0.0
    %1532 = vmatpush1.msra.mxu0 0.0
    %1533 = vmatprep.subr.mxu0 0.0
    %1534 = vmatpush1.msra.mxu0 0.0
    %1535 = vmatprep.subr.mxu0 0.0
    %1536 = vmatpush1.msra.mxu0 0.0
    %1537 = vmatprep.subr.mxu0 0.0
    %1538 = vmatpush1.msra.mxu0 0.0
    %1539 = vmatprep.subr.mxu0 0.0
    %1540 = vmatpush1.msra.mxu0 0.0
    %1541 = vmatprep.subr.mxu0 0.0
    %1542 = vmatpush1.msra.mxu0 0.0
    %1543 = vmatprep.subr.mxu0 0.0
    %1544 = vmatpush1.msra.mxu0 0.0
    %1545 = vmatprep.subr.mxu0 0.0
    %1546 = vmatpush1.msra.mxu0 0.0
    %1547 = vmatprep.subr.mxu0 0.0
    %1548 = vmatpush1.msra.mxu0 0.0
    %1549 = vmatprep.subr.mxu0 0.0
    %1550 = vmatpush1.msra.mxu0 0.0
    %1551 = vmatprep.subr.mxu0 0.0
    %1552 = vmatpush1.msra.mxu0 0.0
    %1553 = vmatprep.subr.mxu0 0.0
    %1554 = vmatpush1.msra.mxu0 0.0
    %1555 = vmatprep.subr.mxu0 0.0
    %1556 = vmatpush1.msra.mxu0 0.0
    %1557 = vmatprep.subr.mxu0 0.0
    %1558 = vmatpush1.msra.mxu0 0.0
    %1559 = vmatprep.subr.mxu0 0.0
    %1560 = vmatpush1.msra.mxu0 0.0
    %1561 = vmatprep.subr.mxu0 0.0
    %1562 = vmatpush1.msra.mxu0 0.0
    %1563 = vmatprep.mubr.f32.mxu0 0.0
    %1564 = vmatmul.mubr.f32.gmra.mrb[0].mxu0 %v1494
    %v1565 = vpop.f32.mrb[0].mxu0
    %v1566 = vadd.f32 0.0, %v1565
    %v1567 = vpop.f32.mrb[0].mxu0
    %1568 = vmatprep.mubr.f32.mxu0 0.0
    %1569 = vmatmul.mubr.f32.gmra.mrb[0].mxu0 %v1497
    %v1570 = vpop.f32.mrb[0].mxu0
    %v1571 = vadd.f32 0.0, %v1570
    %v1572 = vpop.f32.mrb[0].mxu0
    %1573 = vdwg.mxu0
    %v1575 = vlaneseq
    %v1576 = vshrl.u32 %v1575, 7
    %v1577 = vsub.s32 0, %v1576
    %v1578 = vrot.slane %v1293, %v1577
    %v1580 = vadd.f32 %v1578, %v1566
    %v1581 = vadd.f32 %v1578, %v1571
    %1582 = vrot.lane.b32.xlu0 %v1279, 112
    %v1583 = vpop.permute.xlu0 %1582
    %1584 = vrot.lane.b32.xlu0 %v1284, 112
    %v1585 = vpop.permute.xlu0 %1584
    %1586 = vrot.lane.b32.xlu0 %v1279, 80
    %v1587 = vpop.permute.xlu0 %1586
    %1588 = vrot.lane.b32.xlu0 %v1284, 80
    %v1589 = vpop.permute.xlu0 %1588
    %v1590 = vsel %vm317, %v1583, 0
    %v1592 = vsel %vm317, %v1585, 0
    %v1594 = vsel %vm317, %v1587, 0
    %v1596 = vsel %vm317, %v1589, 0
    %1598 = vmatprep.subr.mxu0 0.0
    %1599 = vmatpush1.xpose.msra.mxu0 %v1594
    %1600 = vmatprep.subr.mxu0 0.0
    %1601 = vmatpush1.xpose.msra.mxu0 %v1596
    %1602 = vmatprep.subr.mxu0 0.0
    %1603 = vmatpush1.xpose.msra.mxu0 0.0
    %1604 = vmatprep.subr.mxu0 0.0
    %1605 = vmatpush1.xpose.msra.mxu0 0.0
    %1606 = vmatprep.subr.mxu0 0.0
    %1607 = vmatpush1.xpose.msra.mxu0 0.0
    %1608 = vmatprep.subr.mxu0 0.0
    %1609 = vmatpush1.xpose.msra.mxu0 0.0
    %1610 = vmatprep.subr.mxu0 0.0
    %1611 = vmatpush1.xpose.msra.mxu0 0.0
    %1612 = vmatprep.subr.mxu0 0.0
    %1613 = vmatpush1.xpose.msra.mxu0 0.0
    %1614 = vmatprep.subr.mxu0 0.0
    %1615 = vmatpush1.xpose.msra.mxu0 0.0
    %1616 = vmatprep.subr.mxu0 0.0
    %1617 = vmatpush1.xpose.msra.mxu0 0.0
    %1618 = vmatprep.subr.mxu0 0.0
    %1619 = vmatpush1.xpose.msra.mxu0 0.0
    %1620 = vmatprep.subr.mxu0 0.0
    %1621 = vmatpush1.xpose.msra.mxu0 0.0
    %1622 = vmatprep.subr.mxu0 0.0
    %1623 = vmatpush1.xpose.msra.mxu0 0.0
    %1624 = vmatprep.subr.mxu0 0.0
    %1625 = vmatpush1.xpose.msra.mxu0 0.0
    %1626 = vmatprep.subr.mxu0 0.0
    %1627 = vmatpush1.xpose.msra.mxu0 0.0
    %1628 = vmatprep.subr.mxu0 0.0
    %1629 = vmatpush1.xpose.msra.mxu0 0.0
    %1630 = vmatprep.subr.mxu0 0.0
    %1631 = vmatpush1.xpose.msra.mxu0 0.0
    %1632 = vmatprep.subr.mxu0 0.0
    %1633 = vmatpush1.xpose.msra.mxu0 0.0
    %1634 = vmatprep.subr.mxu0 0.0
    %1635 = vmatpush1.xpose.msra.mxu0 0.0
    %1636 = vmatprep.subr.mxu0 0.0
    %1637 = vmatpush1.xpose.msra.mxu0 0.0
    %1638 = vmatprep.subr.mxu0 0.0
    %1639 = vmatpush1.xpose.msra.mxu0 0.0
    %1640 = vmatprep.subr.mxu0 0.0
    %1641 = vmatpush1.xpose.msra.mxu0 0.0
    %1642 = vmatprep.subr.mxu0 0.0
    %1643 = vmatpush1.xpose.msra.mxu0 0.0
    %1644 = vmatprep.subr.mxu0 0.0
    %1645 = vmatpush1.xpose.msra.mxu0 0.0
    %1646 = vmatprep.subr.mxu0 0.0
    %1647 = vmatpush1.xpose.msra.mxu0 0.0
    %1648 = vmatprep.subr.mxu0 0.0
    %1649 = vmatpush1.xpose.msra.mxu0 0.0
    %1650 = vmatprep.subr.mxu0 0.0
    %1651 = vmatpush1.xpose.msra.mxu0 0.0
    %1652 = vmatprep.subr.mxu0 0.0
    %1653 = vmatpush1.xpose.msra.mxu0 0.0
    %1654 = vmatprep.subr.mxu0 0.0
    %1655 = vmatpush1.xpose.msra.mxu0 0.0
    %1656 = vmatprep.subr.mxu0 0.0
    %1657 = vmatpush1.xpose.msra.mxu0 0.0
    %1658 = vmatprep.subr.mxu0 0.0
    %1659 = vmatpush1.xpose.msra.mxu0 0.0
    %1660 = vmatprep.subr.mxu0 0.0
    %1661 = vmatpush1.xpose.msra.mxu0 0.0
    %1662 = vmatprep.mubr.f32.mxu0 0.0
    %1663 = vmatmul.mubr.f32.gmra.mrb[0].mxu0 %v1590
    %v1664 = vpop.f32.mrb[0].mxu0
    %v1665 = vadd.f32 %v164, %v1664
    %v1666 = vpop.f32.mrb[0].mxu0
    %1667 = vmatprep.mubr.f32.mxu0 0.0
    %1668 = vmatmul.mubr.f32.gmra.mrb[0].mxu0 %v1592
    %v1669 = vpop.f32.mrb[0].mxu0
    %v1670 = vadd.f32 %v165, %v1669
    %v1671 = vpop.f32.mrb[0].mxu0
    %1672 = vdwg.mxu0
    %v1673 = vsel %vm401, %v1665, -inf
    %1674 = vmax.xlane.f32.xlu0 %v1673
    %v1675 = vpop.xlane.xlu0 %1674
    %v1676 = vsel %vm405, %v1670, -inf
    %1677 = vmax.xlane.f32.xlu0 %v1676
    %v1678 = vpop.xlane.xlu0 %1677
    %v1679 = vsub.f32 %v1665, %v1675
    %v1680 = vsub.f32 %v1670, %v1678
    %v1681 = vmul.f32 %v1679, 1.442695
    %v1682 = vpow.pop %v1681
    %v1683 = vmul.f32 %v1680, 1.442695
    %v1684 = vpow.pop %v1683
    %v1685 = vsel %vm401, %v1682, 0.0
    %1686 = vadd.xlane.f32.xlu0 %v1685
    %v1687 = vpop.xlane.xlu0 %1686
    %v1688 = vsel %vm405, %v1684, 0.0
    %1689 = vadd.xlane.f32.xlu0 %v1688
    %v1690 = vpop.xlane.xlu0 %1689
    %v1691 = vrcp.pop %v1687
    %v1692 = vrcp.pop %v1690
    %v1693 = vmul.f32 %v1682, %v1691
    %v1694 = vmul.f32 %v1684, %v1692
    %1695 = vrot.lane.b32.xlu0 %v1279, 48
    %v1696 = vpop.permute.xlu0 %1695
    %1697 = vrot.lane.b32.xlu0 %v1284, 48
    %v1698 = vpop.permute.xlu0 %1697
    %v1701 = vsel %vm401, %v1693, 0
    %v1704 = vsel %vm401, %v1694, 0
    %v1706 = vsel %vm436, %v1698, 0
    %1708 = vmatprep.subr.mxu0 0.0
    %1709 = vmatpush1.msra.mxu0 %v1696
    %1710 = vmatprep.subr.mxu0 0.0
    %1711 = vmatpush1.msra.mxu0 %v1706
    %1712 = vmatprep.subr.mxu0 0.0
    %1713 = vmatpush1.msra.mxu0 0.0
    %1714 = vmatprep.subr.mxu0 0.0
    %1715 = vmatpush1.msra.mxu0 0.0
    %1716 = vmatprep.subr.mxu0 0.0
    %1717 = vmatpush1.msra.mxu0 0.0
    %1718 = vmatprep.subr.mxu0 0.0
    %1719 = vmatpush1.msra.mxu0 0.0
    %1720 = vmatprep.subr.mxu0 0.0
    %1721 = vmatpush1.msra.mxu0 0.0
    %1722 = vmatprep.subr.mxu0 0.0
    %1723 = vmatpush1.msra.mxu0 0.0
    %1724 = vmatprep.subr.mxu0 0.0
    %1725 = vmatpush1.msra.mxu0 0.0
    %1726 = vmatprep.subr.mxu0 0.0
    %1727 = vmatpush1.msra.mxu0 0.0
    %1728 = vmatprep.subr.mxu0 0.0
    %1729 = vmatpush1.msra.mxu0 0.0
    %1730 = vmatprep.subr.mxu0 0.0
    %1731 = vmatpush1.msra.mxu0 0.0
    %1732 = vmatprep.subr.mxu0 0.0
    %1733 = vmatpush1.msra.mxu0 0.0
    %1734 = vmatprep.subr.mxu0 0.0
    %1735 = vmatpush1.msra.mxu0 0.0
    %1736 = vmatprep.subr.mxu0 0.0
    %1737 = vmatpush1.msra.mxu0 0.0
    %1738 = vmatprep.subr.mxu0 0.0
    %1739 = vmatpush1.msra.mxu0 0.0
    %1740 = vmatprep.subr.mxu0 0.0
    %1741 = vmatpush1.msra.mxu0 0.0
    %1742 = vmatprep.subr.mxu0 0.0
    %1743 = vmatpush1.msra.mxu0 0.0
    %1744 = vmatprep.subr.mxu0 0.0
    %1745 = vmatpush1.msra.mxu0 0.0
    %1746 = vmatprep.subr.mxu0 0.0
    %1747 = vmatpush1.msra.mxu0 0.0
    %1748 = vmatprep.subr.mxu0 0.0
    %1749 = vmatpush1.msra.mxu0 0.0
    %1750 = vmatprep.subr.mxu0 0.0
    %1751 = vmatpush1.msra.mxu0 0.0
    %1752 = vmatprep.subr.mxu0 0.0
    %1753 = vmatpush1.msra.mxu0 0.0
    %1754 = vmatprep.subr.mxu0 0.0
    %1755 = vmatpush1.msra.mxu0 0.0
    %1756 = vmatprep.subr.mxu0 0.0
    %1757 = vmatpush1.msra.mxu0 0.0
    %1758 = vmatprep.subr.mxu0 0.0
    %1759 = vmatpush1.msra.mxu0 0.0
    %1760 = vmatprep.subr.mxu0 0.0
    %1761 = vmatpush1.msra.mxu0 0.0
    %1762 = vmatprep.subr.mxu0 0.0
    %1763 = vmatpush1.msra.mxu0 0.0
    %1764 = vmatprep.subr.mxu0 0.0
    %1765 = vmatpush1.msra.mxu0 0.0
    %1766 = vmatprep.subr.mxu0 0.0
    %1767 = vmatpush1.msra.mxu0 0.0
    %1768 = vmatprep.subr.mxu0 0.0
    %1769 = vmatpush1.msra.mxu0 0.0
    %1770 = vmatprep.subr.mxu0 0.0
    %1771 = vmatpush1.msra.mxu0 0.0
    %1772 = vmatprep.mubr.f32.mxu0 0.0
    %1773 = vmatmul.mubr.f32.gmra.mrb[0].mxu0 %v1701
    %v1774 = vpop.f32.mrb[0].mxu0
    %v1775 = vadd.f32 0.0, %v1774
    %v1776 = vpop.f32.mrb[0].mxu0
    %1777 = vmatprep.mubr.f32.mxu0 0.0
    %1778 = vmatmul.mubr.f32.gmra.mrb[0].mxu0 %v1704
    %v1779 = vpop.f32.mrb[0].mxu0
    %v1780 = vadd.f32 0.0, %v1779
    %v1781 = vpop.f32.mrb[0].mxu0
    %1782 = vdwg.mxu0
    %v1784 = vsel %vm317, %v1775, 0
    %v1787 = vsel %vm317, %v1780, 0
    %1789 = vmatprep.subr.mxu0 0.0
    %1790 = vmatpush1.msra.mxu0 %v1290
    %1791 = vmatprep.subr.mxu0 0.0
    %1792 = vmatpush1.msra.mxu0 %v1291
    %1793 = vmatprep.subr.mxu0 0.0
    %1794 = vmatpush1.msra.mxu0 0.0
    %1795 = vmatprep.subr.mxu0 0.0
    %1796 = vmatpush1.msra.mxu0 0.0
    %1797 = vmatprep.subr.mxu0 0.0
    %1798 = vmatpush1.msra.mxu0 0.0
    %1799 = vmatprep.subr.mxu0 0.0
    %1800 = vmatpush1.msra.mxu0 0.0
    %1801 = vmatprep.subr.mxu0 0.0
    %1802 = vmatpush1.msra.mxu0 0.0
    %1803 = vmatprep.subr.mxu0 0.0
    %1804 = vmatpush1.msra.mxu0 0.0
    %1805 = vmatprep.subr.mxu0 0.0
    %1806 = vmatpush1.msra.mxu0 0.0
    %1807 = vmatprep.subr.mxu0 0.0
    %1808 = vmatpush1.msra.mxu0 0.0
    %1809 = vmatprep.subr.mxu0 0.0
    %1810 = vmatpush1.msra.mxu0 0.0
    %1811 = vmatprep.subr.mxu0 0.0
    %1812 = vmatpush1.msra.mxu0 0.0
    %1813 = vmatprep.subr.mxu0 0.0
    %1814 = vmatpush1.msra.mxu0 0.0
    %1815 = vmatprep.subr.mxu0 0.0
    %1816 = vmatpush1.msra.mxu0 0.0
    %1817 = vmatprep.subr.mxu0 0.0
    %1818 = vmatpush1.msra.mxu0 0.0
    %1819 = vmatprep.subr.mxu0 0.0
    %1820 = vmatpush1.msra.mxu0 0.0
    %1821 = vmatprep.subr.mxu0 0.0
    %1822 = vmatpush1.msra.mxu0 0.0
    %1823 = vmatprep.subr.mxu0 0.0
    %1824 = vmatpush1.msra.mxu0 0.0
    %1825 = vmatprep.subr.mxu0 0.0
    %1826 = vmatpush1.msra.mxu0 0.0
    %1827 = vmatprep.subr.mxu0 0.0
    %1828 = vmatpush1.msra.mxu0 0.0
    %1829 = vmatprep.subr.mxu0 0.0
    %1830 = vmatpush1.msra.mxu0 0.0
    %1831 = vmatprep.subr.mxu0 0.0
    %1832 = vmatpush1.msra.mxu0 0.0
    %1833 = vmatprep.subr.mxu0 0.0
    %1834 = vmatpush1.msra.mxu0 0.0
    %1835 = vmatprep.subr.mxu0 0.0
    %1836 = vmatpush1.msra.mxu0 0.0
    %1837 = vmatprep.subr.mxu0 0.0
    %1838 = vmatpush1.msra.mxu0 0.0
    %1839 = vmatprep.subr.mxu0 0.0
    %1840 = vmatpush1.msra.mxu0 0.0
    %1841 = vmatprep.subr.mxu0 0.0
    %1842 = vmatpush1.msra.mxu0 0.0
    %1843 = vmatprep.subr.mxu0 0.0
    %1844 = vmatpush1.msra.mxu0 0.0
    %1845 = vmatprep.subr.mxu0 0.0
    %1846 = vmatpush1.msra.mxu0 0.0
    %1847 = vmatprep.subr.mxu0 0.0
    %1848 = vmatpush1.msra.mxu0 0.0
    %1849 = vmatprep.subr.mxu0 0.0
    %1850 = vmatpush1.msra.mxu0 0.0
    %1851 = vmatprep.subr.mxu0 0.0
    %1852 = vmatpush1.msra.mxu0 0.0
    %1853 = vmatprep.mubr.f32.mxu0 0.0
    %1854 = vmatmul.mubr.f32.gmra.mrb[0].mxu0 %v1784
    %v1855 = vpop.f32.mrb[0].mxu0
    %v1856 = vadd.f32 0.0, %v1855
    %v1857 = vpop.f32.mrb[0].mxu0
    %1858 = vmatprep.mubr.f32.mxu0 0.0
    %1859 = vmatmul.mubr.f32.gmra.mrb[0].mxu0 %v1787
    %v1860 = vpop.f32.mrb[0].mxu0
    %v1861 = vadd.f32 0.0, %v1860
    %v1862 = vpop.f32.mrb[0].mxu0
    %1863 = vdwg.mxu0
    %v1864 = vadd.f32 %v1580, %v1856
    %v1865 = vadd.f32 %v1581, %v1861
    %v1866 = vadd.f32 %v1145, %v1864
    %v1867 = vadd.f32 %v1146, %v1865
    %s1868 = scalar_lea.vmem %s5, 6
    %v1869 = vld [vmem:[%s1868] sm:$0x1]
    %s1870 = scalar_lea.vmem %s5, 7
    %v1871 = vld [vmem:[%s1870] sm:$0x1]
    %v1872 = vsel %vm169, %v1866, 0.0
    %1873 = vadd.xlane.f32.xlu0 %v1872
    %v1874 = vpop.xlane.xlu0 %1873
    %v1875 = vsel %vm173, %v1867, 0.0
    %1876 = vadd.xlane.f32.xlu0 %v1875
    %v1877 = vpop.xlane.xlu0 %1876
    %v1878 = vmul.f32 %v1874, %v177
    %v1879 = vmul.f32 %v1877, %v177
    %v1880 = vsub.f32 %v1866, %v1878
    %v1881 = vsub.f32 %v1867, %v1879
    %v1882 = vmul.f32 %v1880, %v1880
    %v1883 = vmul.f32 %v1881, %v1881
    %v1884 = vsel %vm169, %v1882, 0.0
    %1885 = vadd.xlane.f32.xlu0 %v1884
    %v1886 = vpop.xlane.xlu0 %1885
    %v1887 = vsel %vm173, %v1883, 0.0
    %1888 = vadd.xlane.f32.xlu0 %v1887
    %v1889 = vpop.xlane.xlu0 %1888
    %v1890 = vmul.f32 %v1886, %v177
    %v1891 = vmul.f32 %v1889, %v177
    %v1892 = vadd.f32 %v1890, 1e-12
    %v1893 = vadd.f32 %v1891, 1e-12
    %v1894 = vrsqrt.pop %v1892
    %v1895 = vrsqrt.pop %v1893
    %v1896 = vmul.f32 %v1880, %v1894
    %v1897 = vmul.f32 %v1881, %v1895
    %v1899 = vlaneseq
    %v1900 = vshrl.u32 %v1899, 7
    %v1901 = vsub.s32 0, %v1900
    %v1902 = vrot.slane %v1869, %v1901
    %v1904 = vmul.f32 %v1896, %v1902
    %v1905 = vmul.f32 %v1897, %v1902
    %v1907 = vlaneseq
    %v1908 = vshrl.u32 %v1907, 7
    %v1909 = vsub.s32 0, %v1908
    %v1910 = vrot.slane %v1871, %v1909
    %v1912 = vadd.f32 %v1904, %v1910
    %v1913 = vadd.f32 %v1905, %v1910
    %s1914 = scalar_lea.vmem %s10, 32
    %v1915 = vld [vmem:[%s1914] sm:$0xff]
    %v1916 = vld [vmem:[%s1914 + $0x8] sm:$0xff]
    %v1917 = vld [vmem:[%s1914 + $0x10] sm:$0xff]
    %v1918 = vld [vmem:[%s1914 + $0x18] sm:$0xff]
    %s1919 = scalar_lea.vmem %s11, 1
    %v1920 = vld [vmem:[%s1919] sm:$0x1]
    %v1922 = vlaneseq
    %v1923 = vshrl.u32 %v1922, 7
    %v1924 = vsub.s32 0, %v1923
    %v1925 = vrot.slane %v1920, %v1924
    %v1928 = vsel %vm169, %v1912, 0
    %v1931 = vsel %vm169, %v1913, 0
    %1933 = vmatprep.subr.mxu0 0.0
    %1934 = vmatpush1.msra.mxu0 %v1915
    %1935 = vmatprep.subr.mxu0 0.0
    %1936 = vmatpush1.msra.mxu0 %v1916
    %1937 = vmatprep.subr.mxu0 0.0
    %1938 = vmatpush1.msra.mxu0 %v1917
    %1939 = vmatprep.subr.mxu0 0.0
    %1940 = vmatpush1.msra.mxu0 %v1918
    %1941 = vmatprep.subr.mxu0 0.0
    %1942 = vmatpush1.msra.mxu0 0.0
    %1943 = vmatprep.subr.mxu0 0.0
    %1944 = vmatpush1.msra.mxu0 0.0
    %1945 = vmatprep.subr.mxu0 0.0
    %1946 = vmatpush1.msra.mxu0 0.0
    %1947 = vmatprep.subr.mxu0 0.0
    %1948 = vmatpush1.msra.mxu0 0.0
    %1949 = vmatprep.subr.mxu0 0.0
    %1950 = vmatpush1.msra.mxu0 0.0
    %1951 = vmatprep.subr.mxu0 0.0
    %1952 = vmatpush1.msra.mxu0 0.0
    %1953 = vmatprep.subr.mxu0 0.0
    %1954 = vmatpush1.msra.mxu0 0.0
    %1955 = vmatprep.subr.mxu0 0.0
    %1956 = vmatpush1.msra.mxu0 0.0
    %1957 = vmatprep.subr.mxu0 0.0
    %1958 = vmatpush1.msra.mxu0 0.0
    %1959 = vmatprep.subr.mxu0 0.0
    %1960 = vmatpush1.msra.mxu0 0.0
    %1961 = vmatprep.subr.mxu0 0.0
    %1962 = vmatpush1.msra.mxu0 0.0
    %1963 = vmatprep.subr.mxu0 0.0
    %1964 = vmatpush1.msra.mxu0 0.0
    %1965 = vmatprep.subr.mxu0 0.0
    %1966 = vmatpush1.msra.mxu0 0.0
    %1967 = vmatprep.subr.mxu0 0.0
    %1968 = vmatpush1.msra.mxu0 0.0
    %1969 = vmatprep.subr.mxu0 0.0
    %1970 = vmatpush1.msra.mxu0 0.0
    %1971 = vmatprep.subr.mxu0 0.0
    %1972 = vmatpush1.msra.mxu0 0.0
    %1973 = vmatprep.subr.mxu0 0.0
    %1974 = vmatpush1.msra.mxu0 0.0
    %1975 = vmatprep.subr.mxu0 0.0
    %1976 = vmatpush1.msra.mxu0 0.0
    %1977 = vmatprep.subr.mxu0 0.0
    %1978 = vmatpush1.msra.mxu0 0.0
    %1979 = vmatprep.subr.mxu0 0.0
    %1980 = vmatpush1.msra.mxu0 0.0
    %1981 = vmatprep.subr.mxu0 0.0
    %1982 = vmatpush1.msra.mxu0 0.0
    %1983 = vmatprep.subr.mxu0 0.0
    %1984 = vmatpush1.msra.mxu0 0.0
    %1985 = vmatprep.subr.mxu0 0.0
    %1986 = vmatpush1.msra.mxu0 0.0
    %1987 = vmatprep.subr.mxu0 0.0
    %1988 = vmatpush1.msra.mxu0 0.0
    %1989 = vmatprep.subr.mxu0 0.0
    %1990 = vmatpush1.msra.mxu0 0.0
    %1991 = vmatprep.subr.mxu0 0.0
    %1992 = vmatpush1.msra.mxu0 0.0
    %1993 = vmatprep.subr.mxu0 0.0
    %1994 = vmatpush1.msra.mxu0 0.0
    %1995 = vmatprep.subr.mxu0 0.0
    %1996 = vmatpush1.msra.mxu0 0.0
    %1997 = vmatprep.mubr.f32.mxu0 0.0
    %1998 = vmatmul.mubr.f32.gmra.mrb[0].mxu0 %v1928
    %v1999 = vpop.f32.mrb[0].mxu0
    %v2000 = vadd.f32 %v1925, %v1999
    %v2001 = vpop.f32.mrb[0].mxu0
    %2002 = vmatprep.mubr.f32.mxu0 0.0
    %2003 = vmatmul.mubr.f32.gmra.mrb[0].mxu0 %v1931
    %v2004 = vpop.f32.mrb[0].mxu0
    %v2005 = vadd.f32 %v1925, %v2004
    %v2006 = vpop.f32.mrb[0].mxu0
    %2007 = vdwg.mxu0
    %v2008 = vmul.f32 %v2000, 0.5
    %v2009 = vmul.f32 %v2005, 0.5
    %v2010 = vmul.f32 %v2000, 0.044715
    %v2011 = vmul.f32 %v2005, 0.044715
    %v2012 = vmul.f32 %v2010, %v2000
    %v2013 = vmul.f32 %v2011, %v2005
    %v2014 = vmul.f32 %v2012, %v2000
    %v2015 = vmul.f32 %v2013, %v2005
    %v2016 = vadd.f32 %v2000, %v2014
    %v2017 = vadd.f32 %v2005, %v2015
    %v2018 = vmul.f32 %v2016, 0.7978846
    %v2019 = vmul.f32 %v2017, 0.7978846
    %v2020 = vtanh.pop %v2018
    %v2021 = vtanh.pop %v2019
    %v2022 = vadd.f32 %v2020, 1.0
    %v2023 = vadd.f32 %v2021, 1.0
    %v2024 = vmul.f32 %v2008, %v2022
    %v2025 = vmul.f32 %v2009, %v2023
    %s2026 = scalar_lea.vmem %s12, 128
    %v2027 = vld [vmem:[%s2026] sm:$0xff]
    %v2028 = vld [vmem:[%s2026 + $0x8] sm:$0xff]
    %v2029 = vld [vmem:[%s2026 + $0x10] sm:$0xff]
    %v2030 = vld [vmem:[%s2026 + $0x18] sm:$0xff]
    %v2031 = vld [vmem:[%s2026 + $0x20] sm:$0xff]
    %v2032 = vld [vmem:[%s2026 + $0x28] sm:$0xff]
    %v2033 = vld [vmem:[%s2026 + $0x30] sm:$0xff]
    %v2034 = vld [vmem:[%s2026 + $0x38] sm:$0xff]
    %v2035 = vld [vmem:[%s2026 + $0x40] sm:$0xff]
    %v2036 = vld [vmem:[%s2026 + $0x48] sm:$0xff]
    %v2037 = vld [vmem:[%s2026 + $0x50] sm:$0xff]
    %v2038 = vld [vmem:[%s2026 + $0x58] sm:$0xff]
    %v2039 = vld [vmem:[%s2026 + $0x60] sm:$0xff]
    %v2040 = vld [vmem:[%s2026 + $0x68] sm:$0xff]
    %v2041 = vld [vmem:[%s2026 + $0x70] sm:$0xff]
    %v2042 = vld [vmem:[%s2026 + $0x78] sm:$0xff]
    %2043 = vmatprep.subr.mxu0 0.0
    %2044 = vmatpush1.msra.mxu0 %v2027
    %2045 = vmatprep.subr.mxu0 0.0
    %2046 = vmatpush1.msra.mxu0 %v2028
    %2047 = vmatprep.subr.mxu0 0.0
    %2048 = vmatpush1.msra.mxu0 %v2029
    %2049 = vmatprep.subr.mxu0 0.0
    %2050 = vmatpush1.msra.mxu0 %v2030
    %2051 = vmatprep.subr.mxu0 0.0
    %2052 = vmatpush1.msra.mxu0 %v2031
    %2053 = vmatprep.subr.mxu0 0.0
    %2054 = vmatpush1.msra.mxu0 %v2032
    %2055 = vmatprep.subr.mxu0 0.0
    %2056 = vmatpush1.msra.mxu0 %v2033
    %2057 = vmatprep.subr.mxu0 0.0
    %2058 = vmatpush1.msra.mxu0 %v2034
    %2059 = vmatprep.subr.mxu0 0.0
    %2060 = vmatpush1.msra.mxu0 %v2035
    %2061 = vmatprep.subr.mxu0 0.0
    %2062 = vmatpush1.msra.mxu0 %v2036
    %2063 = vmatprep.subr.mxu0 0.0
    %2064 = vmatpush1.msra.mxu0 %v2037
    %2065 = vmatprep.subr.mxu0 0.0
    %2066 = vmatpush1.msra.mxu0 %v2038
    %2067 = vmatprep.subr.mxu0 0.0
    %2068 = vmatpush1.msra.mxu0 %v2039
    %2069 = vmatprep.subr.mxu0 0.0
    %2070 = vmatpush1.msra.mxu0 %v2040
    %2071 = vmatprep.subr.mxu0 0.0
    %2072 = vmatpush1.msra.mxu0 %v2041
    %2073 = vmatprep.subr.mxu0 0.0
    %2074 = vmatpush1.msra.mxu0 %v2042
    %2075 = vmatprep.subr.mxu0 0.0
    %2076 = vmatpush1.msra.mxu0 0.0
    %2077 = vmatprep.subr.mxu0 0.0
    %2078 = vmatpush1.msra.mxu0 0.0
    %2079 = vmatprep.subr.mxu0 0.0
    %2080 = vmatpush1.msra.mxu0 0.0
    %2081 = vmatprep.subr.mxu0 0.0
    %2082 = vmatpush1.msra.mxu0 0.0
    %2083 = vmatprep.subr.mxu0 0.0
    %2084 = vmatpush1.msra.mxu0 0.0
    %2085 = vmatprep.subr.mxu0 0.0
    %2086 = vmatpush1.msra.mxu0 0.0
    %2087 = vmatprep.subr.mxu0 0.0
    %2088 = vmatpush1.msra.mxu0 0.0
    %2089 = vmatprep.subr.mxu0 0.0
    %2090 = vmatpush1.msra.mxu0 0.0
    %2091 = vmatprep.subr.mxu0 0.0
    %2092 = vmatpush1.msra.mxu0 0.0
    %2093 = vmatprep.subr.mxu0 0.0
    %2094 = vmatpush1.msra.mxu0 0.0
    %2095 = vmatprep.subr.mxu0 0.0
    %2096 = vmatpush1.msra.mxu0 0.0
    %2097 = vmatprep.subr.mxu0 0.0
    %2098 = vmatpush1.msra.mxu0 0.0
    %2099 = vmatprep.subr.mxu0 0.0
    %2100 = vmatpush1.msra.mxu0 0.0
    %2101 = vmatprep.subr.mxu0 0.0
    %2102 = vmatpush1.msra.mxu0 0.0
    %2103 = vmatprep.subr.mxu0 0.0
    %2104 = vmatpush1.msra.mxu0 0.0
    %2105 = vmatprep.subr.mxu0 0.0
    %2106 = vmatpush1.msra.mxu0 0.0
    %2107 = vmatprep.mubr.f32.mxu0 0.0
    %2108 = vmatmul.mubr.f32.gmra.mrb[0].mxu0 %v2024
    %v2109 = vpop.f32.mrb[0].mxu0
    %v2110 = vadd.f32 0.0, %v2109
    %v2111 = vpop.f32.mrb[0].mxu0
    %2112 = vmatprep.mubr.f32.mxu0 0.0
    %2113 = vmatmul.mubr.f32.gmra.mrb[0].mxu0 %v2025
    %v2114 = vpop.f32.mrb[0].mxu0
    %v2115 = vadd.f32 0.0, %v2114
    %v2116 = vpop.f32.mrb[0].mxu0
    %2117 = vdwg.mxu0
    %v2118 = vadd.f32 %v1866, %v2110
    %v2119 = vadd.f32 %v1867, %v2115
    %s2120 = scalar_lea.vmem %s13, 1
    %v2121 = vld [vmem:[%s2120] sm:$0x1]
    %v2123 = vlaneseq
    %v2124 = vshrl.u32 %v2123, 7
    %v2125 = vsub.s32 0, %v2124
    %v2126 = vrot.slane %v2121, %v2125
    %v2128 = vadd.f32 %v2118, %v2126
    %v2129 = vadd.f32 %v2119, %v2126
    %v2130 = vld [vmem:[%s4] sm:$0x3]
    %v2132 = vsel %vm401, %v2130, 0
    %v2135 = vsel %vm436, %v2129, 0
    %2137 = vmatprep.subr.mxu0 0.0
    %2138 = vmatpush1.msra.mxu0 %v2128
    %2139 = vmatprep.subr.mxu0 0.0
    %2140 = vmatpush1.msra.mxu0 %v2135
    %2141 = vmatprep.subr.mxu0 0.0
    %2142 = vmatpush1.msra.mxu0 0.0
    %2143 = vmatprep.subr.mxu0 0.0
    %2144 = vmatpush1.msra.mxu0 0.0
    %2145 = vmatprep.subr.mxu0 0.0
    %2146 = vmatpush1.msra.mxu0 0.0
    %2147 = vmatprep.subr.mxu0 0.0
    %2148 = vmatpush1.msra.mxu0 0.0
    %2149 = vmatprep.subr.mxu0 0.0
    %2150 = vmatpush1.msra.mxu0 0.0
    %2151 = vmatprep.subr.mxu0 0.0
    %2152 = vmatpush1.msra.mxu0 0.0
    %2153 = vmatprep.subr.mxu0 0.0
    %2154 = vmatpush1.msra.mxu0 0.0
    %2155 = vmatprep.subr.mxu0 0.0
    %2156 = vmatpush1.msra.mxu0 0.0
    %2157 = vmatprep.subr.mxu0 0.0
    %2158 = vmatpush1.msra.mxu0 0.0
    %2159 = vmatprep.subr.mxu0 0.0
    %2160 = vmatpush1.msra.mxu0 0.0
    %2161 = vmatprep.subr.mxu0 0.0
    %2162 = vmatpush1.msra.mxu0 0.0
    %2163 = vmatprep.subr.mxu0 0.0
    %2164 = vmatpush1.msra.mxu0 0.0
    %2165 = vmatprep.subr.mxu0 0.0
    %2166 = vmatpush1.msra.mxu0 0.0
    %2167 = vmatprep.subr.mxu0 0.0
    %2168 = vmatpush1.msra.mxu0 0.0
    %2169 = vmatprep.subr.mxu0 0.0
    %2170 = vmatpush1.msra.mxu0 0.0
    %2171 = vmatprep.subr.mxu0 0.0
    %2172 = vmatpush1.msra.mxu0 0.0
    %2173 = vmatprep.subr.mxu0 0.0
    %2174 = vmatpush1.msra.mxu0 0.0
    %2175 = vmatprep.subr.mxu0 0.0
    %2176 = vmatpush1.msra.mxu0 0.0
    %2177 = vmatprep.subr.mxu0 0.0
    %2178 = vmatpush1.msra.mxu0 0.0
    %2179 = vmatprep.subr.mxu0 0.0
    %2180 = vmatpush1.msra.mxu0 0.0
    %2181 = vmatprep.subr.mxu0 0.0
    %2182 = vmatpush1.msra.mxu0 0.0
    %2183 = vmatprep.subr.mxu0 0.0
    %2184 = vmatpush1.msra.mxu0 0.0
    %2185 = vmatprep.subr.mxu0 0.0
    %2186 = vmatpush1.msra.mxu0 0.0
    %2187 = vmatprep.subr.mxu0 0.0
    %2188 = vmatpush1.msra.mxu0 0.0
    %2189 = vmatprep.subr.mxu0 0.0
    %2190 = vmatpush1.msra.mxu0 0.0
    %2191 = vmatprep.subr.mxu0 0.0
    %2192 = vmatpush1.msra.mxu0 0.0
    %2193 = vmatprep.subr.mxu0 0.0
    %2194 = vmatpush1.msra.mxu0 0.0
    %2195 = vmatprep.subr.mxu0 0.0
    %2196 = vmatpush1.msra.mxu0 0.0
    %2197 = vmatprep.subr.mxu0 0.0
    %2198 = vmatpush1.msra.mxu0 0.0
    %2199 = vmatprep.subr.mxu0 0.0
    %2200 = vmatpush1.msra.mxu0 0.0
    %2201 = vmatprep.mubr.f32.mxu0 0.0
    %2202 = vmatmul.mubr.f32.gmra.mrb[0].mxu0 %v2132
    %v2203 = vpop.f32.mrb[0].mxu0
    %v2204 = vadd.f32 0.0, %v2203
    %v2205 = vpop.f32.mrb[0].mxu0
    %2206 = vdwg.mxu0
    %v2207 = vld [vmem:[%s14] sm:$0x1]
    %s2208 = scalar_lea.vmem %s14, 1
    %v2209 = vld [vmem:[%s2208] sm:$0x1]
    %v2210 = vsel %vm173, %v2204, 0.0
    %2211 = vadd.xlane.f32.xlu0 %v2210
    %v2212 = vpop.xlane.xlu0 %2211
    %v2213 = vmul.f32 %v2212, %v177
    %v2214 = vsub.f32 %v2204, %v2213
    %v2215 = vmul.f32 %v2214, %v2214
    %v2216 = vsel %vm173, %v2215, 0.0
    %2217 = vadd.xlane.f32.xlu0 %v2216
    %v2218 = vpop.xlane.xlu0 %2217
    %v2219 = vmul.f32 %v2218, %v177
    %v2220 = vadd.f32 %v2219, 1e-12
    %v2221 = vrsqrt.pop %v2220
    %v2222 = vmul.f32 %v2214, %v2221
    %v2224 = vlaneseq
    %v2225 = vshrl.u32 %v2224, 7
    %v2226 = vsub.s32 0, %v2225
    %v2227 = vrot.slane %v2207, %v2226
    %v2229 = vmul.f32 %v2222, %v2227
    %v2231 = vlaneseq
    %v2232 = vshrl.u32 %v2231, 7
    %v2233 = vsub.s32 0, %v2232
    %v2234 = vrot.slane %v2209, %v2233
    %v2236 = vadd.f32 %v2229, %v2234
    %2237 = vst.msk [vmem:[#allocation2] sm:$0x3] %vm173, %v2236
    // Predicated region
    $region62: #{phikon_forward.1} parent=1 // pred_check
      _
    $region63: #{phikon_forward.1} parent=1 // pred_check_branch
      %2239 = sbr.rel (0) target = $region65
    $region64: #{phikon_forward.1} parent=1 // pred_region
      %s2241 = ssub.s32 32, 32
      %2242 = vsyncadd [#allocation3], %s2241
      %s2244 = sshll.u32 [#allocation2], 4
      %s2245 = int_to_ptr.vmem [resolvable:$true] %s2244
      %2247 = dma.vmem_to_hbm [thread:$0]  %s2245, 32, %s15, [#allocation3]
    $region65: #{phikon_forward.1} parent=1 // pred_fallthru
      _
    // Predicated region
    $region66: #{phikon_forward.1} parent=1 // pred_check
      _
    $region67: #{phikon_forward.1} parent=1 // pred_check_branch
      %2249 = sbr.rel (0) target = $region69
    $region68: #{phikon_forward.1} parent=1 // pred_region
      %2250 = dma.done [#allocation3], 32
    $region69: #{phikon_forward.1} parent=1 // pred_fallthru
      _
    %2251 = vsyncpa [#allocation3], 1

</llo_original>
